<compile_context>
chip_gen: v6e
topology: v6e:2x2x1
jax: 0.10.0
libtpu: 0.0.40
codegen_flags: <defaults>
</compile_context>

<pallas_src>
import jax
import jax.numpy as jnp
import numpy as np
from jax import lax
from jax.experimental import pallas as pl
from jax.experimental.pallas import tpu as pltpu

EPS = 1e-5          # InstanceNorm3d default eps
NEG_SLOPE = 0.01    # LeakyReLU default negative_slope


# ---------------------------------------------------------------------------
# helpers
# ---------------------------------------------------------------------------
def _pick_spatial_tile(total, max_tile=2048):
    """Largest lane-tile that divides `total`, is a multiple of 128 and <= max_tile.
    Falls back to the full extent (single block) when no such tile exists."""
    if total <= max_tile:
        return total
    t = (max_tile // 128) * 128
    while t >= 128:
        if total % t == 0:
            return t
        t -= 128
    return total


def _make_hw_masks(Hp, Wp):
    """(9, 1, Hp*Wp) f32 masks: 1 where the (kh,kw)-shifted tap stays inside the
    H/W extent (i.e. where PyTorch's zero padding would NOT apply)."""
    h = jnp.arange(Hp)
    w = jnp.arange(Wp)
    rows = []
    for kh in range(3):
        for kw in range(3):
            mh = jnp.logical_and(h + kh - 1 >= 0, h + kh - 1 < Hp)
            mw = jnp.logical_and(w + kw - 1 >= 0, w + kw - 1 < Wp)
            rows.append(jnp.logical_and(mh[:, None], mw[None, :]).reshape(1, Hp * Wp))
    return jnp.stack(rows, axis=0).astype(jnp.float32)


# ---------------------------------------------------------------------------
# Kernel 1: ConvTranspose3d(k=2, s=2, bias=False) as a single matmul, tiled over
# the flattened coarse spatial axis, with fused InstanceNorm1 partial statistics.
#   x block : (1, Cin, S_t)      (spatial on lanes)
#   w       : (8*Cmid, Cin)      rows ordered (kd, kh, kw, c)
#   outputs : y_pre (1, 8*Cmid, S_t), per-tile sum / sumsq (1, 1, 8*Cmid, 1)
# ---------------------------------------------------------------------------
def _deconv_stats_kernel(x_ref, w_ref, y_ref, ps_ref, pq_ref):
    y = jnp.dot(w_ref[...], x_ref[0], preferred_element_type=jnp.float32)
    y_ref[0] = y
    ps_ref[0, 0] = jnp.sum(y, axis=1, keepdims=True)
    pq_ref[0, 0] = jnp.sum(y * y, axis=1, keepdims=True)


def deconv_with_stats(x3, w2, *, max_tile=2048):
    # x3: (N, Cin, S_coarse)   w2: (8*Cmid, Cin)
    N, Cin, S = x3.shape
    K8 = w2.shape[0]
    st = _pick_spatial_tile(S, max_tile)
    T = S // st
    out_shapes = (
        jax.ShapeDtypeStruct((N, K8, S), jnp.float32),
        jax.ShapeDtypeStruct((N, T, K8, 1), jnp.float32),
        jax.ShapeDtypeStruct((N, T, K8, 1), jnp.float32),
    )
    return pl.pallas_call(
        _deconv_stats_kernel,
        out_shape=out_shapes,
        grid=(N, T),
        in_specs=[
            pl.BlockSpec((1, Cin, st), lambda n, t: (n, 0, t)),
            pl.BlockSpec((K8, Cin), lambda n, t: (0, 0)),
        ],
        out_specs=(
            pl.BlockSpec((1, K8, st), lambda n, t: (n, 0, t)),
            pl.BlockSpec((1, 1, K8, 1), lambda n, t: (n, t, 0, 0)),
            pl.BlockSpec((1, 1, K8, 1), lambda n, t: (n, t, 0, 0)),
        ),
        compiler_params=pltpu.CompilerParams(
            dimension_semantics=("parallel", "parallel")),
    )(x3, w2)


# ---------------------------------------------------------------------------
# Kernel 2: Conv3d(3x3x3, s=1, p=1, bias=False) with
#   * InstanceNorm1 + LeakyReLU applied on the fly (normalized tensor never hits HBM)
#   * in-VMEM im2col: 3 depth slices x 9 lane-shifted (kh,kw) views, boundary masks
#   * one MXU matmul per (n, d) output slice with K = 27*Cmid
#   * fused InstanceNorm2 partial statistics
# Input ypad: (N, Dp+2, Cmid, S_pad) where the last axis is the flattened (Hp,Wp)
# plane padded by Wp+1 zeros on each side; depth padded by 1 on each side.
# ---------------------------------------------------------------------------
def _make_conv_kernel(Hp, Wp, n_d):
    S_hw = Hp * Wp
    P = Wp + 1

    def kernel(y0, y1, y2, w_ref, mu_ref, inv_ref, mask_ref,
               z_ref, ps_ref, pq_ref):
        d = pl.program_id(1)
        mu = mu_ref[0]                  # (Cmid, 1)
        inv = inv_ref[0]                # (Cmid, 1)
        refs = (y0, y1, y2)
        pieces = []
        for kd in range(3):
            x = refs[kd][0, 0]          # (Cmid, S_pad)
            # InstanceNorm1 + LeakyReLU, fused (re-done per kd slice; cheap VPU work)
            xn = (x - mu) * inv
            xn = jnp.where(xn >= 0, xn, NEG_SLOPE * xn)
            # zero the whole slice when this kd falls into the depth padding
            dpos = d + kd
            valid = jnp.logical_and(dpos >= 1, dpos <= n_d)
            xn = xn * valid.astype(xn.dtype)
            for kh in range(3):
                for kw in range(3):
                    off = P + (kh - 1) * Wp + (kw - 1)
                    piece = xn[:, off:off + S_hw] * mask_ref[kh * 3 + kw]
                    pieces.append(piece)
        a = jnp.concatenate(pieces, axis=0)                       # (27*Cmid, S_hw)
        z = jnp.dot(w_ref[...], a, preferred_element_type=jnp.float32)  # (Cout, S_hw)
        z_ref[0, 0] = z
        ps_ref[0, 0] = jnp.sum(z, axis=1, keepdims=True)
        pq_ref[0, 0] = jnp.sum(z * z, axis=1, keepdims=True)

    return kernel


def conv3x3_fused_norm1(ypad, w_mat, mu1, inv1, masks, Dp, Hp, Wp):
    N = ypad.shape[0]
    Cmid = ypad.shape[2]
    S_pad = ypad.shape[3]
    Cout = w_mat.shape[0]
    S_hw = Hp * Wp
    kernel = _make_conv_kernel(Hp, Wp, Dp)

    def y_spec(kd):
        return pl.BlockSpec((1, 1, Cmid, S_pad),
                            lambda n, d, kd=kd: (n, d + kd, 0, 0))

    out_shapes = (
        jax.ShapeDtypeStruct((N, Dp, Cout, S_hw), jnp.float32),
        jax.ShapeDtypeStruct((N, Dp, Cout, 1), jnp.float32),
        jax.ShapeDtypeStruct((N, Dp, Cout, 1), jnp.float32),
    )
    return pl.pallas_call(
        kernel,
        out_shape=out_shapes,
        grid=(N, Dp),
        in_specs=[
            y_spec(0), y_spec(1), y_spec(2),
            pl.BlockSpec((Cout, w_mat.shape[1]), lambda n, d: (0, 0)),
            pl.BlockSpec((1, Cmid, 1), lambda n, d: (n, 0, 0)),
            pl.BlockSpec((1, Cmid, 1), lambda n, d: (n, 0, 0)),
            pl.BlockSpec((9, 1, S_hw), lambda n, d: (0, 0, 0)),
        ],
        out_specs=(
            pl.BlockSpec((1, 1, Cout, S_hw), lambda n, d: (n, d, 0, 0)),
            pl.BlockSpec((1, 1, Cout, 1), lambda n, d: (n, d, 0, 0)),
            pl.BlockSpec((1, 1, Cout, 1), lambda n, d: (n, d, 0, 0)),
        ),
        compiler_params=pltpu.CompilerParams(
            dimension_semantics=("parallel", "parallel")),
    )(ypad, ypad, ypad, w_mat, mu1, inv1, masks)


# ---------------------------------------------------------------------------
# Kernel 3: InstanceNorm2 + LeakyReLU application (stats precomputed), lane-dense.
# ---------------------------------------------------------------------------
def _norm_lrelu_kernel(z_ref, mu_ref, inv_ref, o_ref):
    z = (z_ref[0, 0] - mu_ref[0]) * inv_ref[0]
    o_ref[0, 0] = jnp.where(z >= 0, z, NEG_SLOPE * z)


def norm_lrelu_apply(z, mu, inv):
    # z: (N, Dp, C, S_hw);  mu / inv: (N, C, 1)
    N, Dp, C, S_hw = z.shape
    return pl.pallas_call(
        _norm_lrelu_kernel,
        out_shape=jax.ShapeDtypeStruct(z.shape, jnp.float32),
        grid=(N, Dp),
        in_specs=[
            pl.BlockSpec((1, 1, C, S_hw), lambda n, d: (n, d, 0, 0)),
            pl.BlockSpec((1, C, 1), lambda n, d: (n, 0, 0)),
            pl.BlockSpec((1, C, 1), lambda n, d: (n, 0, 0)),
        ],
        out_specs=pl.BlockSpec((1, 1, C, S_hw), lambda n, d: (n, d, 0, 0)),
        compiler_params=pltpu.CompilerParams(
            dimension_semantics=("parallel", "parallel")),
    )(z, mu, inv)


# ---------------------------------------------------------------------------
# DecoderBlock forward
# ---------------------------------------------------------------------------
def decoder_block(x, w_deconv, w_conv):
    # x: (N, Cin, D, H, W); w_deconv: (Cin, Cmid, 2,2,2); w_conv: (Cout, Cmid, 3,3,3)
    N, Cin, D, H, W = x.shape
    Cmid = w_deconv.shape[1]
    Cout = w_conv.shape[0]
    Dp, Hp, Wp = 2 * D, 2 * H, 2 * W
    S_hw = Hp * Wp
    S_coarse = D * H * W

    # ---- stage 1: ConvTranspose3d(k=2,s=2) as one tiled matmul + norm1 stats
    x3 = x.reshape(N, Cin, S_coarse)                               # free reshape
    w2 = jnp.transpose(w_deconv, (2, 3, 4, 1, 0)).reshape(8 * Cmid, Cin)
    y_pre, ps1, pq1 = deconv_with_stats(x3, w2)

    count1 = Dp * Hp * Wp
    s1 = ps1.reshape(N, -1, 8, Cmid).sum(axis=(1, 2))              # (N, Cmid)
    q1 = pq1.reshape(N, -1, 8, Cmid).sum(axis=(1, 2))
    mean1 = s1 / count1
    var1 = q1 / count1 - mean1 * mean1                             # biased variance
    mu1 = mean1.reshape(N, Cmid, 1)
    iv1 = lax.rsqrt(var1 + EPS).reshape(N, Cmid, 1)

    # ---- 2x upsample interleave (XLA transpose) + depth / plane zero padding
    y_int = y_pre.reshape(N, 2, 2, 2, Cmid, D, H, W)
    y_int = jnp.transpose(y_int, (0, 5, 1, 4, 6, 2, 7, 3))         # (N,D,2,Cmid,H,2,W,2)
    y_int = y_int.reshape(N, Dp, Cmid, S_hw)
    pad_hw = Wp + 1
    ypad = jnp.pad(y_int, ((0, 0), (1, 1), (0, 0), (pad_hw, pad_hw)))

    # ---- stage 2: Conv3d(3,1,1) with fused norm1-apply + LeakyReLU + norm2 stats
    w_mat = jnp.transpose(w_conv, (0, 2, 3, 4, 1)).reshape(Cout, 27 * Cmid)
    masks = _make_hw_masks(Hp, Wp)
    z_pre, ps2, pq2 = conv3x3_fused_norm1(ypad, w_mat, mu1, iv1, masks, Dp, Hp, Wp)

    count2 = Dp * S_hw
    s2 = ps2.sum(axis=(1, 3))                                      # (N, Cout)
    q2 = pq2.sum(axis=(1, 3))
    mean2 = s2 / count2
    var2 = q2 / count2 - mean2 * mean2
    mu2 = mean2.reshape(N, Cout, 1)
    iv2 = lax.rsqrt(var2 + EPS).reshape(N, Cout, 1)

    # ---- stage 3: InstanceNorm2 + LeakyReLU
    out = norm_lrelu_apply(z_pre, mu2, iv2)                        # (N, Dp, Cout, S_hw)
    out = out.reshape(N, Dp, Cout, Hp, Wp)
    return jnp.transpose(out, (0, 2, 1, 3, 4))                     # -> NCDHW


# ---------------------------------------------------------------------------
# Pure-JAX reference (independent path) for the correctness check.
# ---------------------------------------------------------------------------
def _instnorm_ref(x):                                              # NCDHW
    mean = x.mean(axis=(2, 3, 4), keepdims=True)
    var = ((x - mean) ** 2).mean(axis=(2, 3, 4), keepdims=True)
    return (x - mean) / jnp.sqrt(var + EPS)


def _leaky(x):
    return jnp.where(x >= 0, x, NEG_SLOPE * x)


def reference(x, w_deconv, w_conv):
    N, Cin, D, H, W = x.shape
    Cmid = w_deconv.shape[1]
    y = jnp.einsum('ncdhw,coxyz->nodxhywz', x, w_deconv)
    y = y.reshape(N, Cmid, 2 * D, 2 * H, 2 * W)
    y = _leaky(_instnorm_ref(y))
    z = lax.conv_general_dilated(
        y, w_conv, window_strides=(1, 1, 1),
        padding=((1, 1), (1, 1), (1, 1)),
        dimension_numbers=('NCDHW', 'OIDHW', 'NCDHW'))
    return _leaky(_instnorm_ref(z))


if __name__ == "__main__":
    key = jax.random.PRNGKey(0)
    k1, k2, k3 = jax.random.split(key, 3)

    N, Cin, Cout = 2, 8, 4
    D = H = W = 4
    Cmid = Cin // 2

    x = jax.random.normal(k1, (N, Cin, D, H, W), jnp.float32)
    w_deconv = jax.random.normal(k2, (Cin, Cmid, 2, 2, 2), jnp.float32) * 0.2
    w_conv = jax.random.normal(k3, (Cout, Cmid, 3, 3, 3), jnp.float32) * 0.2

    out = jax.jit(decoder_block)(x, w_deconv, w_conv)
    out = jax.block_until_ready(out)

    assert out.shape == (N, Cout, 2 * D, 2 * H, 2 * W)
    ref = reference(x, w_deconv, w_conv)
    np.testing.assert_allclose(np.asarray(out), np.asarray(ref), rtol=2e-3, atol=2e-3)

    print("KERNEL_OK")
</pallas_src>

<mosaic_0001>
module attributes {stable_mosaic.version = 11 : i64} {
  func.func @_deconv_stats_kernel(%arg0: i32, %arg1: i32, %arg2: memref<1x8x64xf32, #tpu.memory_space<vmem>>, %arg3: memref<32x8xf32, #tpu.memory_space<vmem>>, %arg4: memref<1x32x64xf32, #tpu.memory_space<vmem>>, %arg5: memref<1x1x32x1xf32, #tpu.memory_space<vmem>>, %arg6: memref<1x1x32x1xf32, #tpu.memory_space<vmem>>) attributes {dimension_semantics = [#tpu.dimension_semantics<parallel>, #tpu.dimension_semantics<parallel>], iteration_bounds = array<i64: 2, 1>, scalar_prefetch = 0 : i64, scratch_operands = 0 : i64, tpu.core_type = #tpu.core_type<tc>, window_params = [{transform_indices = @transform_0, window_bounds = array<i64: 1, 8, 64>}, {pipeline_mode = #tpu.pipeline_mode<synchronous>, transform_indices = @transform_1, window_bounds = array<i64: 32, 8>}, {transform_indices = @transform_2, window_bounds = array<i64: 1, 32, 64>}, {transform_indices = @transform_3, window_bounds = array<i64: 1, 1, 32, 1>}, {transform_indices = @transform_4, window_bounds = array<i64: 1, 1, 32, 1>}]} {
    %c0 = arith.constant 0 : index
    %c0_0 = arith.constant 0 : index
    %0 = vector.load %arg3[%c0, %c0_0] : memref<32x8xf32, #tpu.memory_space<vmem>>, vector<32x8xf32>
    %c0_1 = arith.constant 0 : index
    %c0_2 = arith.constant 0 : index
    %c0_3 = arith.constant 0 : index
    %1 = vector.load %arg2[%c0_1, %c0_2, %c0_3] : memref<1x8x64xf32, #tpu.memory_space<vmem>>, vector<1x8x64xf32>
    %2 = vector.shape_cast %1 : vector<1x8x64xf32> to vector<8x64xf32>
    %cst = arith.constant dense<0.000000e+00> : vector<32x64xf32>
    %3 = tpu.matmul %0, %2, %cst {dimension_numbers = #tpu.dot_dimension_numbers<[1], [0], [0], [1], [0, 0, 1, 1], [], []>} : vector<32x8xf32>, vector<8x64xf32>, vector<32x64xf32> -> vector<32x64xf32>
    %c0_4 = arith.constant 0 : index
    %c0_5 = arith.constant 0 : index
    %c0_6 = arith.constant 0 : index
    %4 = vector.load %arg4[%c0_4, %c0_5, %c0_6] : memref<1x32x64xf32, #tpu.memory_space<vmem>>, vector<1x32x64xf32>
    %5 = vector.shape_cast %4 : vector<1x32x64xf32> to vector<32x64xf32>
    %6 = vector.shape_cast %3 : vector<32x64xf32> to vector<1x32x64xf32>
    tpu.vector_store %arg4[%c0_4, %c0_5, %c0_6], %6 {strides = array<i32>} : memref<1x32x64xf32, #tpu.memory_space<vmem>>, vector<1x32x64xf32>,
    %cst_7 = arith.constant dense<0.000000e+00> : vector<32xf32>
    %7 = vector.multi_reduction <add>, %3, %cst_7 [1] : vector<32x64xf32> to vector<32xf32>
    %8 = vector.shape_cast %7 : vector<32xf32> to vector<32x1xf32>
    %c0_8 = arith.constant 0 : index
    %c0_9 = arith.constant 0 : index
    %c0_10 = arith.constant 0 : index
    %c0_11 = arith.constant 0 : index
    %9 = vector.load %arg5[%c0_8, %c0_9, %c0_10, %c0_11] : memref<1x1x32x1xf32, #tpu.memory_space<vmem>>, vector<1x1x32x1xf32>
    %10 = vector.shape_cast %9 : vector<1x1x32x1xf32> to vector<32x1xf32>
    %11 = vector.shape_cast %8 : vector<32x1xf32> to vector<1x1x32x1xf32>
    tpu.vector_store %arg5[%c0_8, %c0_9, %c0_10, %c0_11], %11 {strides = array<i32>} : memref<1x1x32x1xf32, #tpu.memory_space<vmem>>, vector<1x1x32x1xf32>,
    %12 = arith.mulf %3, %3 : vector<32x64xf32>
    %cst_12 = arith.constant dense<0.000000e+00> : vector<32xf32>
    %13 = vector.multi_reduction <add>, %12, %cst_12 [1] : vector<32x64xf32> to vector<32xf32>
    %14 = vector.shape_cast %13 : vector<32xf32> to vector<32x1xf32>
    %c0_13 = arith.constant 0 : index
    %c0_14 = arith.constant 0 : index
    %c0_15 = arith.constant 0 : index
    %c0_16 = arith.constant 0 : index
    %15 = vector.load %arg6[%c0_13, %c0_14, %c0_15, %c0_16] : memref<1x1x32x1xf32, #tpu.memory_space<vmem>>, vector<1x1x32x1xf32>
    %16 = vector.shape_cast %15 : vector<1x1x32x1xf32> to vector<32x1xf32>
    %17 = vector.shape_cast %14 : vector<32x1xf32> to vector<1x1x32x1xf32>
    tpu.vector_store %arg6[%c0_13, %c0_14, %c0_15, %c0_16], %17 {strides = array<i32>} : memref<1x1x32x1xf32, #tpu.memory_space<vmem>>, vector<1x1x32x1xf32>,
    return
  }
  func.func @transform_0(%arg0: i32, %arg1: i32) -> (i32, i32, i32) {
    %c0_i32 = arith.constant 0 : i32
    %c0_i32_0 = arith.constant 0 : i32
    return %arg0, %c0_i32, %arg1 : i32, i32, i32
  }
  func.func @transform_1(%arg0: i32, %arg1: i32) -> (i32, i32) {
    %c0_i32 = arith.constant 0 : i32
    %c0_i32_0 = arith.constant 0 : i32
    %c0_i32_1 = arith.constant 0 : i32
    return %c0_i32, %c0_i32_0 : i32, i32
  }
  func.func @transform_2(%arg0: i32, %arg1: i32) -> (i32, i32, i32) {
    %c0_i32 = arith.constant 0 : i32
    %c0_i32_0 = arith.constant 0 : i32
    return %arg0, %c0_i32, %arg1 : i32, i32, i32
  }
  func.func @transform_3(%arg0: i32, %arg1: i32) -> (i32, i32, i32, i32) {
    %c0_i32 = arith.constant 0 : i32
    %c0_i32_0 = arith.constant 0 : i32
    %c0_i32_1 = arith.constant 0 : i32
    return %arg0, %arg1, %c0_i32, %c0_i32_0 : i32, i32, i32, i32
  }
  func.func @transform_4(%arg0: i32, %arg1: i32) -> (i32, i32, i32, i32) {
    %c0_i32 = arith.constant 0 : i32
    %c0_i32_0 = arith.constant 0 : i32
    %c0_i32_1 = arith.constant 0 : i32
    return %arg0, %arg1, %c0_i32, %c0_i32_0 : i32, i32, i32, i32
  }
}

module attributes {stable_mosaic.version = 11 : i64} {
  func.func @kernel(%arg0: i32, %arg1: i32, %arg2: memref<1x1x4x82xf32, #tpu.memory_space<vmem>>, %arg3: memref<1x1x4x82xf32, #tpu.memory_space<vmem>>, %arg4: memref<1x1x4x82xf32, #tpu.memory_space<vmem>>, %arg5: memref<4x108xf32, #tpu.memory_space<vmem>>, %arg6: memref<1x4x1xf32, #tpu.memory_space<vmem>>, %arg7: memref<1x4x1xf32, #tpu.memory_space<vmem>>, %arg8: memref<9x1x64xf32, #tpu.memory_space<vmem>>, %arg9: memref<1x1x4x64xf32, #tpu.memory_space<vmem>>, %arg10: memref<1x1x4x1xf32, #tpu.memory_space<vmem>>, %arg11: memref<1x1x4x1xf32, #tpu.memory_space<vmem>>) attributes {dimension_semantics = [#tpu.dimension_semantics<parallel>, #tpu.dimension_semantics<parallel>], iteration_bounds = array<i64: 2, 8>, scalar_prefetch = 0 : i64, scratch_operands = 0 : i64, tpu.core_type = #tpu.core_type<tc>, window_params = [{transform_indices = @transform_0, window_bounds = array<i64: 1, 1, 4, 82>}, {transform_indices = @transform_1, window_bounds = array<i64: 1, 1, 4, 82>}, {transform_indices = @transform_2, window_bounds = array<i64: 1, 1, 4, 82>}, {pipeline_mode = #tpu.pipeline_mode<synchronous>, transform_indices = @transform_3, window_bounds = array<i64: 4, 108>}, {transform_indices = @transform_4, window_bounds = array<i64: 1, 4, 1>}, {transform_indices = @transform_5, window_bounds = array<i64: 1, 4, 1>}, {pipeline_mode = #tpu.pipeline_mode<synchronous>, transform_indices = @transform_6, window_bounds = array<i64: 9, 1, 64>}, {transform_indices = @transform_7, window_bounds = array<i64: 1, 1, 4, 64>}, {transform_indices = @transform_8, window_bounds = array<i64: 1, 1, 4, 1>}, {transform_indices = @transform_9, window_bounds = array<i64: 1, 1, 4, 1>}]} {
    %c0 = arith.constant 0 : index
    %c0_0 = arith.constant 0 : index
    %c0_1 = arith.constant 0 : index
    %0 = vector.load %arg6[%c0, %c0_0, %c0_1] : memref<1x4x1xf32, #tpu.memory_space<vmem>>, vector<1x4x1xf32>
    %1 = vector.shape_cast %0 : vector<1x4x1xf32> to vector<4x1xf32>
    %c0_2 = arith.constant 0 : index
    %c0_3 = arith.constant 0 : index
    %c0_4 = arith.constant 0 : index
    %2 = vector.load %arg7[%c0_2, %c0_3, %c0_4] : memref<1x4x1xf32, #tpu.memory_space<vmem>>, vector<1x4x1xf32>
    %3 = vector.shape_cast %2 : vector<1x4x1xf32> to vector<4x1xf32>
    %c0_5 = arith.constant 0 : index
    %c0_6 = arith.constant 0 : index
    %c0_7 = arith.constant 0 : index
    %c0_8 = arith.constant 0 : index
    %4 = vector.load %arg2[%c0_5, %c0_6, %c0_7, %c0_8] : memref<1x1x4x82xf32, #tpu.memory_space<vmem>>, vector<1x1x4x82xf32>
    %5 = vector.shape_cast %4 : vector<1x1x4x82xf32> to vector<4x82xf32>
    %6 = vector.broadcast %1 : vector<4x1xf32> to vector<4x82xf32>
    %7 = arith.subf %5, %6 : vector<4x82xf32>
    %8 = vector.broadcast %3 : vector<4x1xf32> to vector<4x82xf32>
    %9 = arith.mulf %7, %8 : vector<4x82xf32>
    %cst = arith.constant 0.000000e+00 : f32
    %10 = vector.broadcast %cst : f32 to vector<4x82xf32>
    %11 = arith.cmpf oge, %9, %10 : vector<4x82xf32>
    %cst_9 = arith.constant 0.00999999977 : f32
    %12 = vector.broadcast %cst_9 : f32 to vector<4x82xf32>
    %13 = arith.mulf %12, %9 : vector<4x82xf32>
    %14 = arith.select %11, %9, %13 : vector<4x82xi1>, vector<4x82xf32>
    %c0_i32 = arith.constant 0 : i32
    %15 = arith.addi %arg1, %c0_i32 : i32
    %c1_i32 = arith.constant 1 : i32
    %16 = arith.cmpi sge, %15, %c1_i32 : i32
    %c8_i32 = arith.constant 8 : i32
    %17 = arith.cmpi sle, %15, %c8_i32 : i32
    %18 = arith.andi %16, %17 : i1
    %19 = arith.extui %18 : i1 to i32
    %20 = arith.sitofp %19 : i32 to f32
    %21 = vector.broadcast %20 : f32 to vector<4x82xf32>
    %22 = arith.mulf %14, %21 : vector<4x82xf32>
    %23 = vector.extract_strided_slice %22 {offsets = [0, 0], sizes = [4, 64], strides = [1, 1]} : vector<4x82xf32> to vector<4x64xf32>
    %c0_10 = arith.constant 0 : index
    %c0_11 = arith.constant 0 : index
    %c0_12 = arith.constant 0 : index
    %24 = vector.load %arg8[%c0_10, %c0_11, %c0_12] : memref<9x1x64xf32, #tpu.memory_space<vmem>>, vector<1x1x64xf32>
    %25 = vector.shape_cast %24 : vector<1x1x64xf32> to vector<1x64xf32>
    %26 = vector.broadcast %25 : vector<1x64xf32> to vector<4x64xf32>
    %27 = arith.mulf %23, %26 : vector<4x64xf32>
    %28 = vector.extract_strided_slice %22 {offsets = [0, 1], sizes = [4, 64], strides = [1, 1]} : vector<4x82xf32> to vector<4x64xf32>
    %c1 = arith.constant 1 : index
    %c0_13 = arith.constant 0 : index
    %c0_14 = arith.constant 0 : index
    %29 = vector.load %arg8[%c1, %c0_13, %c0_14] : memref<9x1x64xf32, #tpu.memory_space<vmem>>, vector<1x1x64xf32>
    %30 = vector.shape_cast %29 : vector<1x1x64xf32> to vector<1x64xf32>
    %31 = vector.broadcast %30 : vector<1x64xf32> to vector<4x64xf32>
    %32 = arith.mulf %28, %31 : vector<4x64xf32>
    %33 = vector.extract_strided_slice %22 {offsets = [0, 2], sizes = [4, 64], strides = [1, 1]} : vector<4x82xf32> to vector<4x64xf32>
    %c2 = arith.constant 2 : index
    %c0_15 = arith.constant 0 : index
    %c0_16 = arith.constant 0 : index
    %34 = vector.load %arg8[%c2, %c0_15, %c0_16] : memref<9x1x64xf32, #tpu.memory_space<vmem>>, vector<1x1x64xf32>
    %35 = vector.shape_cast %34 : vector<1x1x64xf32> to vector<1x64xf32>
    %36 = vector.broadcast %35 : vector<1x64xf32> to vector<4x64xf32>
    %37 = arith.mulf %33, %36 : vector<4x64xf32>
    %38 = vector.extract_strided_slice %22 {offsets = [0, 8], sizes = [4, 64], strides = [1, 1]} : vector<4x82xf32> to vector<4x64xf32>
    %c3 = arith.constant 3 : index
    %c0_17 = arith.constant 0 : index
    %c0_18 = arith.constant 0 : index
    %39 = vector.load %arg8[%c3, %c0_17, %c0_18] : memref<9x1x64xf32, #tpu.memory_space<vmem>>, vector<1x1x64xf32>
    %40 = vector.shape_cast %39 : vector<1x1x64xf32> to vector<1x64xf32>
    %41 = vector.broadcast %40 : vector<1x64xf32> to vector<4x64xf32>
    %42 = arith.mulf %38, %41 : vector<4x64xf32>
    %43 = vector.extract_strided_slice %22 {offsets = [0, 9], sizes = [4, 64], strides = [1, 1]} : vector<4x82xf32> to vector<4x64xf32>
    %c4 = arith.constant 4 : index
    %c0_19 = arith.constant 0 : index
    %c0_20 = arith.constant 0 : index
    %44 = vector.load %arg8[%c4, %c0_19, %c0_20] : memref<9x1x64xf32, #tpu.memory_space<vmem>>, vector<1x1x64xf32>
    %45 = vector.shape_cast %44 : vector<1x1x64xf32> to vector<1x64xf32>
    %46 = vector.broadcast %45 : vector<1x64xf32> to vector<4x64xf32>
    %47 = arith.mulf %43, %46 : vector<4x64xf32>
    %48 = vector.extract_strided_slice %22 {offsets = [0, 10], sizes = [4, 64], strides = [1, 1]} : vector<4x82xf32> to vector<4x64xf32>
    %c5 = arith.constant 5 : index
    %c0_21 = arith.constant 0 : index
    %c0_22 = arith.constant 0 : index
    %49 = vector.load %arg8[%c5, %c0_21, %c0_22] : memref<9x1x64xf32, #tpu.memory_space<vmem>>, vector<1x1x64xf32>
    %50 = vector.shape_cast %49 : vector<1x1x64xf32> to vector<1x64xf32>
    %51 = vector.broadcast %50 : vector<1x64xf32> to vector<4x64xf32>
    %52 = arith.mulf %48, %51 : vector<4x64xf32>
    %53 = vector.extract_strided_slice %22 {offsets = [0, 16], sizes = [4, 64], strides = [1, 1]} : vector<4x82xf32> to vector<4x64xf32>
    %c6 = arith.constant 6 : index
    %c0_23 = arith.constant 0 : index
    %c0_24 = arith.constant 0 : index
    %54 = vector.load %arg8[%c6, %c0_23, %c0_24] : memref<9x1x64xf32, #tpu.memory_space<vmem>>, vector<1x1x64xf32>
    %55 = vector.shape_cast %54 : vector<1x1x64xf32> to vector<1x64xf32>
    %56 = vector.broadcast %55 : vector<1x64xf32> to vector<4x64xf32>
    %57 = arith.mulf %53, %56 : vector<4x64xf32>
    %58 = vector.extract_strided_slice %22 {offsets = [0, 17], sizes = [4, 64], strides = [1, 1]} : vector<4x82xf32> to vector<4x64xf32>
    %c7 = arith.constant 7 : index
    %c0_25 = arith.constant 0 : index
    %c0_26 = arith.constant 0 : index
    %59 = vector.load %arg8[%c7, %c0_25, %c0_26] : memref<9x1x64xf32, #tpu.memory_space<vmem>>, vector<1x1x64xf32>
    %60 = vector.shape_cast %59 : vector<1x1x64xf32> to vector<1x64xf32>
    %61 = vector.broadcast %60 : vector<1x64xf32> to vector<4x64xf32>
    %62 = arith.mulf %58, %61 : vector<4x64xf32>
    %63 = vector.extract_strided_slice %22 {offsets = [0, 18], sizes = [4, 64], strides = [1, 1]} : vector<4x82xf32> to vector<4x64xf32>
    %c8 = arith.constant 8 : index
    %c0_27 = arith.constant 0 : index
    %c0_28 = arith.constant 0 : index
    %64 = vector.load %arg8[%c8, %c0_27, %c0_28] : memref<9x1x64xf32, #tpu.memory_space<vmem>>, vector<1x1x64xf32>
    %65 = vector.shape_cast %64 : vector<1x1x64xf32> to vector<1x64xf32>
    %66 = vector.broadcast %65 : vector<1x64xf32> to vector<4x64xf32>
    %67 = arith.mulf %63, %66 : vector<4x64xf32>
    %c0_29 = arith.constant 0 : index
    %c0_30 = arith.constant 0 : index
    %c0_31 = arith.constant 0 : index
    %c0_32 = arith.constant 0 : index
    %68 = vector.load %arg3[%c0_29, %c0_30, %c0_31, %c0_32] : memref<1x1x4x82xf32, #tpu.memory_space<vmem>>, vector<1x1x4x82xf32>
    %69 = vector.shape_cast %68 : vector<1x1x4x82xf32> to vector<4x82xf32>
    %70 = vector.broadcast %1 : vector<4x1xf32> to vector<4x82xf32>
    %71 = arith.subf %69, %70 : vector<4x82xf32>
    %72 = vector.broadcast %3 : vector<4x1xf32> to vector<4x82xf32>
    %73 = arith.mulf %71, %72 : vector<4x82xf32>
    %cst_33 = arith.constant 0.000000e+00 : f32
    %74 = vector.broadcast %cst_33 : f32 to vector<4x82xf32>
    %75 = arith.cmpf oge, %73, %74 : vector<4x82xf32>
    %cst_34 = arith.constant 0.00999999977 : f32
    %76 = vector.broadcast %cst_34 : f32 to vector<4x82xf32>
    %77 = arith.mulf %76, %73 : vector<4x82xf32>
    %78 = arith.select %75, %73, %77 : vector<4x82xi1>, vector<4x82xf32>
    %c1_i32_35 = arith.constant 1 : i32
    %79 = arith.addi %arg1, %c1_i32_35 : i32
    %c1_i32_36 = arith.constant 1 : i32
    %80 = arith.cmpi sge, %79, %c1_i32_36 : i32
    %c8_i32_37 = arith.constant 8 : i32
    %81 = arith.cmpi sle, %79, %c8_i32_37 : i32
    %82 = arith.andi %80, %81 : i1
    %83 = arith.extui %82 : i1 to i32
    %84 = arith.sitofp %83 : i32 to f32
    %85 = vector.broadcast %84 : f32 to vector<4x82xf32>
    %86 = arith.mulf %78, %85 : vector<4x82xf32>
    %87 = vector.extract_strided_slice %86 {offsets = [0, 0], sizes = [4, 64], strides = [1, 1]} : vector<4x82xf32> to vector<4x64xf32>
    %c0_38 = arith.constant 0 : index
    %c0_39 = arith.constant 0 : index
    %c0_40 = arith.constant 0 : index
    %88 = vector.load %arg8[%c0_38, %c0_39, %c0_40] : memref<9x1x64xf32, #tpu.memory_space<vmem>>, vector<1x1x64xf32>
    %89 = vector.shape_cast %88 : vector<1x1x64xf32> to vector<1x64xf32>
    %90 = vector.broadcast %89 : vector<1x64xf32> to vector<4x64xf32>
    %91 = arith.mulf %87, %90 : vector<4x64xf32>
    %92 = vector.extract_strided_slice %86 {offsets = [0, 1], sizes = [4, 64], strides = [1, 1]} : vector<4x82xf32> to vector<4x64xf32>
    %c1_41 = arith.constant 1 : index
    %c0_42 = arith.constant 0 : index
    %c0_43 = arith.constant 0 : index
    %93 = vector.load %arg8[%c1_41, %c0_42, %c0_43] : memref<9x1x64xf32, #tpu.memory_space<vmem>>, vector<1x1x64xf32>
    %94 = vector.shape_cast %93 : vector<1x1x64xf32> to vector<1x64xf32>
    %95 = vector.broadcast %94 : vector<1x64xf32> to vector<4x64xf32>
    %96 = arith.mulf %92, %95 : vector<4x64xf32>
    %97 = vector.extract_strided_slice %86 {offsets = [0, 2], sizes = [4, 64], strides = [1, 1]} : vector<4x82xf32> to vector<4x64xf32>
    %c2_44 = arith.constant 2 : index
    %c0_45 = arith.constant 0 : index
    %c0_46 = arith.constant 0 : index
    %98 = vector.load %arg8[%c2_44, %c0_45, %c0_46] : memref<9x1x64xf32, #tpu.memory_space<vmem>>, vector<1x1x64xf32>
    %99 = vector.shape_cast %98 : vector<1x1x64xf32> to vector<1x64xf32>
    %100 = vector.broadcast %99 : vector<1x64xf32> to vector<4x64xf32>
    %101 = arith.mulf %97, %100 : vector<4x64xf32>
    %102 = vector.extract_strided_slice %86 {offsets = [0, 8], sizes = [4, 64], strides = [1, 1]} : vector<4x82xf32> to vector<4x64xf32>
    %c3_47 = arith.constant 3 : index
    %c0_48 = arith.constant 0 : index
    %c0_49 = arith.constant 0 : index
    %103 = vector.load %arg8[%c3_47, %c0_48, %c0_49] : memref<9x1x64xf32, #tpu.memory_space<vmem>>, vector<1x1x64xf32>
    %104 = vector.shape_cast %103 : vector<1x1x64xf32> to vector<1x64xf32>
    %105 = vector.broadcast %104 : vector<1x64xf32> to vector<4x64xf32>
    %106 = arith.mulf %102, %105 : vector<4x64xf32>
    %107 = vector.extract_strided_slice %86 {offsets = [0, 9], sizes = [4, 64], strides = [1, 1]} : vector<4x82xf32> to vector<4x64xf32>
    %c4_50 = arith.constant 4 : index
    %c0_51 = arith.constant 0 : index
    %c0_52 = arith.constant 0 : index
    %108 = vector.load %arg8[%c4_50, %c0_51, %c0_52] : memref<9x1x64xf32, #tpu.memory_space<vmem>>, vector<1x1x64xf32>
    %109 = vector.shape_cast %108 : vector<1x1x64xf32> to vector<1x64xf32>
    %110 = vector.broadcast %109 : vector<1x64xf32> to vector<4x64xf32>
    %111 = arith.mulf %107, %110 : vector<4x64xf32>
    %112 = vector.extract_strided_slice %86 {offsets = [0, 10], sizes = [4, 64], strides = [1, 1]} : vector<4x82xf32> to vector<4x64xf32>
    %c5_53 = arith.constant 5 : index
    %c0_54 = arith.constant 0 : index
    %c0_55 = arith.constant 0 : index
    %113 = vector.load %arg8[%c5_53, %c0_54, %c0_55] : memref<9x1x64xf32, #tpu.memory_space<vmem>>, vector<1x1x64xf32>
    %114 = vector.shape_cast %113 : vector<1x1x64xf32> to vector<1x64xf32>
    %115 = vector.broadcast %114 : vector<1x64xf32> to vector<4x64xf32>
    %116 = arith.mulf %112, %115 : vector<4x64xf32>
    %117 = vector.extract_strided_slice %86 {offsets = [0, 16], sizes = [4, 64], strides = [1, 1]} : vector<4x82xf32> to vector<4x64xf32>
    %c6_56 = arith.constant 6 : index
    %c0_57 = arith.constant 0 : index
    %c0_58 = arith.constant 0 : index
    %118 = vector.load %arg8[%c6_56, %c0_57, %c0_58] : memref<9x1x64xf32, #tpu.memory_space<vmem>>, vector<1x1x64xf32>
    %119 = vector.shape_cast %118 : vector<1x1x64xf32> to vector<1x64xf32>
    %120 = vector.broadcast %119 : vector<1x64xf32> to vector<4x64xf32>
    %121 = arith.mulf %117, %120 : vector<4x64xf32>
    %122 = vector.extract_strided_slice %86 {offsets = [0, 17], sizes = [4, 64], strides = [1, 1]} : vector<4x82xf32> to vector<4x64xf32>
    %c7_59 = arith.constant 7 : index
    %c0_60 = arith.constant 0 : index
    %c0_61 = arith.constant 0 : index
    %123 = vector.load %arg8[%c7_59, %c0_60, %c0_61] : memref<9x1x64xf32, #tpu.memory_space<vmem>>, vector<1x1x64xf32>
    %124 = vector.shape_cast %123 : vector<1x1x64xf32> to vector<1x64xf32>
    %125 = vector.broadcast %124 : vector<1x64xf32> to vector<4x64xf32>
    %126 = arith.mulf %122, %125 : vector<4x64xf32>
    %127 = vector.extract_strided_slice %86 {offsets = [0, 18], sizes = [4, 64], strides = [1, 1]} : vector<4x82xf32> to vector<4x64xf32>
    %c8_62 = arith.constant 8 : index
    %c0_63 = arith.constant 0 : index
    %c0_64 = arith.constant 0 : index
    %128 = vector.load %arg8[%c8_62, %c0_63, %c0_64] : memref<9x1x64xf32, #tpu.memory_space<vmem>>, vector<1x1x64xf32>
    %129 = vector.shape_cast %128 : vector<1x1x64xf32> to vector<1x64xf32>
    %130 = vector.broadcast %129 : vector<1x64xf32> to vector<4x64xf32>
    %131 = arith.mulf %127, %130 : vector<4x64xf32>
    %c0_65 = arith.constant 0 : index
    %c0_66 = arith.constant 0 : index
    %c0_67 = arith.constant 0 : index
    %c0_68 = arith.constant 0 : index
    %132 = vector.load %arg4[%c0_65, %c0_66, %c0_67, %c0_68] : memref<1x1x4x82xf32, #tpu.memory_space<vmem>>, vector<1x1x4x82xf32>
    %133 = vector.shape_cast %132 : vector<1x1x4x82xf32> to vector<4x82xf32>
    %134 = vector.broadcast %1 : vector<4x1xf32> to vector<4x82xf32>
    %135 = arith.subf %133, %134 : vector<4x82xf32>
    %136 = vector.broadcast %3 : vector<4x1xf32> to vector<4x82xf32>
    %137 = arith.mulf %135, %136 : vector<4x82xf32>
    %cst_69 = arith.constant 0.000000e+00 : f32
    %138 = vector.broadcast %cst_69 : f32 to vector<4x82xf32>
    %139 = arith.cmpf oge, %137, %138 : vector<4x82xf32>
    %cst_70 = arith.constant 0.00999999977 : f32
    %140 = vector.broadcast %cst_70 : f32 to vector<4x82xf32>
    %141 = arith.mulf %140, %137 : vector<4x82xf32>
    %142 = arith.select %139, %137, %141 : vector<4x82xi1>, vector<4x82xf32>
    %c2_i32 = arith.constant 2 : i32
    %143 = arith.addi %arg1, %c2_i32 : i32
    %c1_i32_71 = arith.constant 1 : i32
    %144 = arith.cmpi sge, %143, %c1_i32_71 : i32
    %c8_i32_72 = arith.constant 8 : i32
    %145 = arith.cmpi sle, %143, %c8_i32_72 : i32
    %146 = arith.andi %144, %145 : i1
    %147 = arith.extui %146 : i1 to i32
    %148 = arith.sitofp %147 : i32 to f32
    %149 = vector.broadcast %148 : f32 to vector<4x82xf32>
    %150 = arith.mulf %142, %149 : vector<4x82xf32>
    %151 = vector.extract_strided_slice %150 {offsets = [0, 0], sizes = [4, 64], strides = [1, 1]} : vector<4x82xf32> to vector<4x64xf32>
    %c0_73 = arith.constant 0 : index
    %c0_74 = arith.constant 0 : index
    %c0_75 = arith.constant 0 : index
    %152 = vector.load %arg8[%c0_73, %c0_74, %c0_75] : memref<9x1x64xf32, #tpu.memory_space<vmem>>, vector<1x1x64xf32>
    %153 = vector.shape_cast %152 : vector<1x1x64xf32> to vector<1x64xf32>
    %154 = vector.broadcast %153 : vector<1x64xf32> to vector<4x64xf32>
    %155 = arith.mulf %151, %154 : vector<4x64xf32>
    %156 = vector.extract_strided_slice %150 {offsets = [0, 1], sizes = [4, 64], strides = [1, 1]} : vector<4x82xf32> to vector<4x64xf32>
    %c1_76 = arith.constant 1 : index
    %c0_77 = arith.constant 0 : index
    %c0_78 = arith.constant 0 : index
    %157 = vector.load %arg8[%c1_76, %c0_77, %c0_78] : memref<9x1x64xf32, #tpu.memory_space<vmem>>, vector<1x1x64xf32>
    %158 = vector.shape_cast %157 : vector<1x1x64xf32> to vector<1x64xf32>
    %159 = vector.broadcast %158 : vector<1x64xf32> to vector<4x64xf32>
    %160 = arith.mulf %156, %159 : vector<4x64xf32>
    %161 = vector.extract_strided_slice %150 {offsets = [0, 2], sizes = [4, 64], strides = [1, 1]} : vector<4x82xf32> to vector<4x64xf32>
    %c2_79 = arith.constant 2 : index
    %c0_80 = arith.constant 0 : index
    %c0_81 = arith.constant 0 : index
    %162 = vector.load %arg8[%c2_79, %c0_80, %c0_81] : memref<9x1x64xf32, #tpu.memory_space<vmem>>, vector<1x1x64xf32>
    %163 = vector.shape_cast %162 : vector<1x1x64xf32> to vector<1x64xf32>
    %164 = vector.broadcast %163 : vector<1x64xf32> to vector<4x64xf32>
    %165 = arith.mulf %161, %164 : vector<4x64xf32>
    %166 = vector.extract_strided_slice %150 {offsets = [0, 8], sizes = [4, 64], strides = [1, 1]} : vector<4x82xf32> to vector<4x64xf32>
    %c3_82 = arith.constant 3 : index
    %c0_83 = arith.constant 0 : index
    %c0_84 = arith.constant 0 : index
    %167 = vector.load %arg8[%c3_82, %c0_83, %c0_84] : memref<9x1x64xf32, #tpu.memory_space<vmem>>, vector<1x1x64xf32>
    %168 = vector.shape_cast %167 : vector<1x1x64xf32> to vector<1x64xf32>
    %169 = vector.broadcast %168 : vector<1x64xf32> to vector<4x64xf32>
    %170 = arith.mulf %166, %169 : vector<4x64xf32>
    %171 = vector.extract_strided_slice %150 {offsets = [0, 9], sizes = [4, 64], strides = [1, 1]} : vector<4x82xf32> to vector<4x64xf32>
    %c4_85 = arith.constant 4 : index
    %c0_86 = arith.constant 0 : index
    %c0_87 = arith.constant 0 : index
    %172 = vector.load %arg8[%c4_85, %c0_86, %c0_87] : memref<9x1x64xf32, #tpu.memory_space<vmem>>, vector<1x1x64xf32>
    %173 = vector.shape_cast %172 : vector<1x1x64xf32> to vector<1x64xf32>
    %174 = vector.broadcast %173 : vector<1x64xf32> to vector<4x64xf32>
    %175 = arith.mulf %171, %174 : vector<4x64xf32>
    %176 = vector.extract_strided_slice %150 {offsets = [0, 10], sizes = [4, 64], strides = [1, 1]} : vector<4x82xf32> to vector<4x64xf32>
    %c5_88 = arith.constant 5 : index
    %c0_89 = arith.constant 0 : index
    %c0_90 = arith.constant 0 : index
    %177 = vector.load %arg8[%c5_88, %c0_89, %c0_90] : memref<9x1x64xf32, #tpu.memory_space<vmem>>, vector<1x1x64xf32>
    %178 = vector.shape_cast %177 : vector<1x1x64xf32> to vector<1x64xf32>
    %179 = vector.broadcast %178 : vector<1x64xf32> to vector<4x64xf32>
    %180 = arith.mulf %176, %179 : vector<4x64xf32>
    %181 = vector.extract_strided_slice %150 {offsets = [0, 16], sizes = [4, 64], strides = [1, 1]} : vector<4x82xf32> to vector<4x64xf32>
    %c6_91 = arith.constant 6 : index
    %c0_92 = arith.constant 0 : index
    %c0_93 = arith.constant 0 : index
    %182 = vector.load %arg8[%c6_91, %c0_92, %c0_93] : memref<9x1x64xf32, #tpu.memory_space<vmem>>, vector<1x1x64xf32>
    %183 = vector.shape_cast %182 : vector<1x1x64xf32> to vector<1x64xf32>
    %184 = vector.broadcast %183 : vector<1x64xf32> to vector<4x64xf32>
    %185 = arith.mulf %181, %184 : vector<4x64xf32>
    %186 = vector.extract_strided_slice %150 {offsets = [0, 17], sizes = [4, 64], strides = [1, 1]} : vector<4x82xf32> to vector<4x64xf32>
    %c7_94 = arith.constant 7 : index
    %c0_95 = arith.constant 0 : index
    %c0_96 = arith.constant 0 : index
    %187 = vector.load %arg8[%c7_94, %c0_95, %c0_96] : memref<9x1x64xf32, #tpu.memory_space<vmem>>, vector<1x1x64xf32>
    %188 = vector.shape_cast %187 : vector<1x1x64xf32> to vector<1x64xf32>
    %189 = vector.broadcast %188 : vector<1x64xf32> to vector<4x64xf32>
    %190 = arith.mulf %186, %189 : vector<4x64xf32>
    %191 = vector.extract_strided_slice %150 {offsets = [0, 18], sizes = [4, 64], strides = [1, 1]} : vector<4x82xf32> to vector<4x64xf32>
    %c8_97 = arith.constant 8 : index
    %c0_98 = arith.constant 0 : index
    %c0_99 = arith.constant 0 : index
    %192 = vector.load %arg8[%c8_97, %c0_98, %c0_99] : memref<9x1x64xf32, #tpu.memory_space<vmem>>, vector<1x1x64xf32>
    %193 = vector.shape_cast %192 : vector<1x1x64xf32> to vector<1x64xf32>
    %194 = vector.broadcast %193 : vector<1x64xf32> to vector<4x64xf32>
    %195 = arith.mulf %191, %194 : vector<4x64xf32>
    %196 = tpu.concatenate %27, %32, %37, %42, %47, %52, %57, %62, %67, %91, %96, %101, %106, %111, %116, %121 in 0 : vector<4x64xf32>, vector<4x64xf32>, vector<4x64xf32>, vector<4x64xf32>, vector<4x64xf32>, vector<4x64xf32>, vector<4x64xf32>, vector<4x64xf32>, vector<4x64xf32>, vector<4x64xf32>, vector<4x64xf32>, vector<4x64xf32>, vector<4x64xf32>, vector<4x64xf32>, vector<4x64xf32>, vector<4x64xf32> -> vector<64x64xf32>
    %197 = tpu.concatenate %126, %131, %155, %160, %165, %170, %175, %180, %185, %190, %195 in 0 : vector<4x64xf32>, vector<4x64xf32>, vector<4x64xf32>, vector<4x64xf32>, vector<4x64xf32>, vector<4x64xf32>, vector<4x64xf32>, vector<4x64xf32>, vector<4x64xf32>, vector<4x64xf32>, vector<4x64xf32> -> vector<44x64xf32>
    %198 = tpu.concatenate %196, %197 in 0 : vector<64x64xf32>, vector<44x64xf32> -> vector<108x64xf32>
    %c0_100 = arith.constant 0 : index
    %c0_101 = arith.constant 0 : index
    %199 = vector.load %arg5[%c0_100, %c0_101] : memref<4x108xf32, #tpu.memory_space<vmem>>, vector<4x108xf32>
    %cst_102 = arith.constant dense<0.000000e+00> : vector<4x64xf32>
    %200 = tpu.matmul %199, %198, %cst_102 {dimension_numbers = #tpu.dot_dimension_numbers<[1], [0], [0], [1], [0, 0, 1, 1], [], []>} : vector<4x108xf32>, vector<108x64xf32>, vector<4x64xf32> -> vector<4x64xf32>
    %c0_103 = arith.constant 0 : index
    %c0_104 = arith.constant 0 : index
    %c0_105 = arith.constant 0 : index
    %c0_106 = arith.constant 0 : index
    %201 = vector.load %arg9[%c0_103, %c0_104, %c0_105, %c0_106] : memref<1x1x4x64xf32, #tpu.memory_space<vmem>>, vector<1x1x4x64xf32>
    %202 = vector.shape_cast %201 : vector<1x1x4x64xf32> to vector<4x64xf32>
    %203 = vector.shape_cast %200 : vector<4x64xf32> to vector<1x1x4x64xf32>
    tpu.vector_store %arg9[%c0_103, %c0_104, %c0_105, %c0_106], %203 {strides = array<i32>} : memref<1x1x4x64xf32, #tpu.memory_space<vmem>>, vector<1x1x4x64xf32>,
    %cst_107 = arith.constant dense<0.000000e+00> : vector<4xf32>
    %204 = vector.multi_reduction <add>, %200, %cst_107 [1] : vector<4x64xf32> to vector<4xf32>
    %205 = vector.shape_cast %204 : vector<4xf32> to vector<4x1xf32>
    %c0_108 = arith.constant 0 : index
    %c0_109 = arith.constant 0 : index
    %c0_110 = arith.constant 0 : index
    %c0_111 = arith.constant 0 : index
    %206 = vector.load %arg10[%c0_108, %c0_109, %c0_110, %c0_111] : memref<1x1x4x1xf32, #tpu.memory_space<vmem>>, vector<1x1x4x1xf32>
    %207 = vector.shape_cast %206 : vector<1x1x4x1xf32> to vector<4x1xf32>
    %208 = vector.shape_cast %205 : vector<4x1xf32> to vector<1x1x4x1xf32>
    tpu.vector_store %arg10[%c0_108, %c0_109, %c0_110, %c0_111], %208 {strides = array<i32>} : memref<1x1x4x1xf32, #tpu.memory_space<vmem>>, vector<1x1x4x1xf32>,
    %209 = arith.mulf %200, %200 : vector<4x64xf32>
    %cst_112 = arith.constant dense<0.000000e+00> : vector<4xf32>
    %210 = vector.multi_reduction <add>, %209, %cst_112 [1] : vector<4x64xf32> to vector<4xf32>
    %211 = vector.shape_cast %210 : vector<4xf32> to vector<4x1xf32>
    %c0_113 = arith.constant 0 : index
    %c0_114 = arith.constant 0 : index
    %c0_115 = arith.constant 0 : index
    %c0_116 = arith.constant 0 : index
    %212 = vector.load %arg11[%c0_113, %c0_114, %c0_115, %c0_116] : memref<1x1x4x1xf32, #tpu.memory_space<vmem>>, vector<1x1x4x1xf32>
    %213 = vector.shape_cast %212 : vector<1x1x4x1xf32> to vector<4x1xf32>
    %214 = vector.shape_cast %211 : vector<4x1xf32> to vector<1x1x4x1xf32>
    tpu.vector_store %arg11[%c0_113, %c0_114, %c0_115, %c0_116], %214 {strides = array<i32>} : memref<1x1x4x1xf32, #tpu.memory_space<vmem>>, vector<1x1x4x1xf32>,
    return
  }
  func.func @transform_0(%arg0: i32, %arg1: i32) -> (i32, i32, i32, i32) {
    %c0_i32 = arith.constant 0 : i32
    %0 = arith.addi %arg1, %c0_i32 : i32
    %c0_i32_0 = arith.constant 0 : i32
    %c0_i32_1 = arith.constant 0 : i32
    %c0_i32_2 = arith.constant 0 : i32
    return %arg0, %0, %c0_i32_0, %c0_i32_1 : i32, i32, i32, i32
  }
  func.func @transform_1(%arg0: i32, %arg1: i32) -> (i32, i32, i32, i32) {
    %c1_i32 = arith.constant 1 : i32
    %0 = arith.addi %arg1, %c1_i32 : i32
    %c0_i32 = arith.constant 0 : i32
    %c0_i32_0 = arith.constant 0 : i32
    %c0_i32_1 = arith.constant 0 : i32
    return %arg0, %0, %c0_i32, %c0_i32_0 : i32, i32, i32, i32
  }
  func.func @transform_2(%arg0: i32, %arg1: i32) -> (i32, i32, i32, i32) {
    %c2_i32 = arith.constant 2 : i32
    %0 = arith.addi %arg1, %c2_i32 : i32
    %c0_i32 = arith.constant 0 : i32
    %c0_i32_0 = arith.constant 0 : i32
    %c0_i32_1 = arith.constant 0 : i32
    return %arg0, %0, %c0_i32, %c0_i32_0 : i32, i32, i32, i32
  }
  func.func @transform_3(%arg0: i32, %arg1: i32) -> (i32, i32) {
    %c0_i32 = arith.constant 0 : i32
    %c0_i32_0 = arith.constant 0 : i32
    %c0_i32_1 = arith.constant 0 : i32
    return %c0_i32, %c0_i32_0 : i32, i32
  }
  func.func @transform_4(%arg0: i32, %arg1: i32) -> (i32, i32, i32) {
    %c0_i32 = arith.constant 0 : i32
    %c0_i32_0 = arith.constant 0 : i32
    %c0_i32_1 = arith.constant 0 : i32
    return %arg0, %c0_i32, %c0_i32_0 : i32, i32, i32
  }
  func.func @transform_5(%arg0: i32, %arg1: i32) -> (i32, i32, i32) {
    %c0_i32 = arith.constant 0 : i32
    %c0_i32_0 = arith.constant 0 : i32
    %c0_i32_1 = arith.constant 0 : i32
    return %arg0, %c0_i32, %c0_i32_0 : i32, i32, i32
  }
  func.func @transform_6(%arg0: i32, %arg1: i32) -> (i32, i32, i32) {
    %c0_i32 = arith.constant 0 : i32
    %c0_i32_0 = arith.constant 0 : i32
    %c0_i32_1 = arith.constant 0 : i32
    %c0_i32_2 = arith.constant 0 : i32
    return %c0_i32, %c0_i32_0, %c0_i32_1 : i32, i32, i32
  }
  func.func @transform_7(%arg0: i32, %arg1: i32) -> (i32, i32, i32, i32) {
    %c0_i32 = arith.constant 0 : i32
    %c0_i32_0 = arith.constant 0 : i32
    %c0_i32_1 = arith.constant 0 : i32
    return %arg0, %arg1, %c0_i32, %c0_i32_0 : i32, i32, i32, i32
  }
  func.func @transform_8(%arg0: i32, %arg1: i32) -> (i32, i32, i32, i32) {
    %c0_i32 = arith.constant 0 : i32
    %c0_i32_0 = arith.constant 0 : i32
    %c0_i32_1 = arith.constant 0 : i32
    return %arg0, %arg1, %c0_i32, %c0_i32_0 : i32, i32, i32, i32
  }
  func.func @transform_9(%arg0: i32, %arg1: i32) -> (i32, i32, i32, i32) {
    %c0_i32 = arith.constant 0 : i32
    %c0_i32_0 = arith.constant 0 : i32
    %c0_i32_1 = arith.constant 0 : i32
    return %arg0, %arg1, %c0_i32, %c0_i32_0 : i32, i32, i32, i32
  }
}

module attributes {stable_mosaic.version = 11 : i64} {
  func.func @_norm_lrelu_kernel(%arg0: i32, %arg1: i32, %arg2: memref<1x1x4x64xf32, #tpu.memory_space<vmem>>, %arg3: memref<1x4x1xf32, #tpu.memory_space<vmem>>, %arg4: memref<1x4x1xf32, #tpu.memory_space<vmem>>, %arg5: memref<1x1x4x64xf32, #tpu.memory_space<vmem>>) attributes {dimension_semantics = [#tpu.dimension_semantics<parallel>, #tpu.dimension_semantics<parallel>], iteration_bounds = array<i64: 2, 8>, scalar_prefetch = 0 : i64, scratch_operands = 0 : i64, tpu.core_type = #tpu.core_type<tc>, window_params = [{transform_indices = @transform_0, window_bounds = array<i64: 1, 1, 4, 64>}, {transform_indices = @transform_1, window_bounds = array<i64: 1, 4, 1>}, {transform_indices = @transform_2, window_bounds = array<i64: 1, 4, 1>}, {transform_indices = @transform_3, window_bounds = array<i64: 1, 1, 4, 64>}]} {
    %c0 = arith.constant 0 : index
    %c0_0 = arith.constant 0 : index
    %c0_1 = arith.constant 0 : index
    %c0_2 = arith.constant 0 : index
    %0 = vector.load %arg2[%c0, %c0_0, %c0_1, %c0_2] : memref<1x1x4x64xf32, #tpu.memory_space<vmem>>, vector<1x1x4x64xf32>
    %1 = vector.shape_cast %0 : vector<1x1x4x64xf32> to vector<4x64xf32>
    %c0_3 = arith.constant 0 : index
    %c0_4 = arith.constant 0 : index
    %c0_5 = arith.constant 0 : index
    %2 = vector.load %arg3[%c0_3, %c0_4, %c0_5] : memref<1x4x1xf32, #tpu.memory_space<vmem>>, vector<1x4x1xf32>
    %3 = vector.shape_cast %2 : vector<1x4x1xf32> to vector<4x1xf32>
    %4 = vector.broadcast %3 : vector<4x1xf32> to vector<4x64xf32>
    %5 = arith.subf %1, %4 : vector<4x64xf32>
    %c0_6 = arith.constant 0 : index
    %c0_7 = arith.constant 0 : index
    %c0_8 = arith.constant 0 : index
    %6 = vector.load %arg4[%c0_6, %c0_7, %c0_8] : memref<1x4x1xf32, #tpu.memory_space<vmem>>, vector<1x4x1xf32>
    %7 = vector.shape_cast %6 : vector<1x4x1xf32> to vector<4x1xf32>
    %8 = vector.broadcast %7 : vector<4x1xf32> to vector<4x64xf32>
    %9 = arith.mulf %5, %8 : vector<4x64xf32>
    %cst = arith.constant 0.000000e+00 : f32
    %10 = vector.broadcast %cst : f32 to vector<4x64xf32>
    %11 = arith.cmpf oge, %9, %10 : vector<4x64xf32>
    %cst_9 = arith.constant 0.00999999977 : f32
    %12 = vector.broadcast %cst_9 : f32 to vector<4x64xf32>
    %13 = arith.mulf %12, %9 : vector<4x64xf32>
    %14 = arith.select %11, %9, %13 : vector<4x64xi1>, vector<4x64xf32>
    %c0_10 = arith.constant 0 : index
    %c0_11 = arith.constant 0 : index
    %c0_12 = arith.constant 0 : index
    %c0_13 = arith.constant 0 : index
    %15 = vector.load %arg5[%c0_10, %c0_11, %c0_12, %c0_13] : memref<1x1x4x64xf32, #tpu.memory_space<vmem>>, vector<1x1x4x64xf32>
    %16 = vector.shape_cast %15 : vector<1x1x4x64xf32> to vector<4x64xf32>
    %17 = vector.shape_cast %14 : vector<4x64xf32> to vector<1x1x4x64xf32>
    tpu.vector_store %arg5[%c0_10, %c0_11, %c0_12, %c0_13], %17 {strides = array<i32>} : memref<1x1x4x64xf32, #tpu.memory_space<vmem>>, vector<1x1x4x64xf32>,
    return
  }
  func.func @transform_0(%arg0: i32, %arg1: i32) -> (i32, i32, i32, i32) {
    %c0_i32 = arith.constant 0 : i32
    %c0_i32_0 = arith.constant 0 : i32
    %c0_i32_1 = arith.constant 0 : i32
    return %arg0, %arg1, %c0_i32, %c0_i32_0 : i32, i32, i32, i32
  }
  func.func @transform_1(%arg0: i32, %arg1: i32) -> (i32, i32, i32) {
    %c0_i32 = arith.constant 0 : i32
    %c0_i32_0 = arith.constant 0 : i32
    %c0_i32_1 = arith.constant 0 : i32
    return %arg0, %c0_i32, %c0_i32_0 : i32, i32, i32
  }
  func.func @transform_2(%arg0: i32, %arg1: i32) -> (i32, i32, i32) {
    %c0_i32 = arith.constant 0 : i32
    %c0_i32_0 = arith.constant 0 : i32
    %c0_i32_1 = arith.constant 0 : i32
    return %arg0, %c0_i32, %c0_i32_0 : i32, i32, i32
  }
  func.func @transform_3(%arg0: i32, %arg1: i32) -> (i32, i32, i32, i32) {
    %c0_i32 = arith.constant 0 : i32
    %c0_i32_0 = arith.constant 0 : i32
    %c0_i32_1 = arith.constant 0 : i32
    return %arg0, %arg1, %c0_i32, %c0_i32_0 : i32, i32, i32, i32
  }
}

</mosaic_0001>

<llo_original>
// kernel: decoder_block.3
$region0: #{decoder_block.3}
  #allocation0 [shape = 'u32[]', space=smem, size = 0x4, offset = 0x4, fixed_abs, tag = 'smem constant byte address 0x4 - core index']
  #allocation1 [shape = 'u32[144,128]{1,0:T(1,128)}', space=vmem, size = 0x12000, scoped, tag = 'internal scratch']
  %s0 = inlined_call_operand.vmem [shape: f32[2,8,64], index: 0, kind: input, shape index: {}]
  %s1 = inlined_call_operand.vmem [shape: f32[32,8], index: 1, kind: input, shape index: {}]
  %s2 = inlined_call_operand.vmem [shape: f32[2,32,64], index: 2, kind: output, shape index: {0}]
  %s3 = inlined_call_operand.vmem [shape: f32[2,1,32,1], index: 3, kind: output, shape index: {1}]
  %s4 = inlined_call_operand.vmem [shape: f32[2,1,32,1], index: 4, kind: output, shape index: {2}]
  %5 = xla_tuple %s2, %s3, %s4
  %s6 = sld [smem:[#allocation0]]
  $region57: #{decoder_block.3} parent=0
    _
  %s8 = ssub.s32 1, %s6
  %s9 = scalar_select 0, %s8, %s6
  loop: start=0, step=1, limit=4
  $region2: #{decoder_block.3} parent=0 // loop_pre_header
    _
  $region3: #{decoder_block.3} parent=0 // loop_header
    %s11 = sphi 0, %s15
    %p12 = scmp.ge.s32.totalorder %s11, 4
    %s18 = sphi 0, %s30
    %s19 = sphi 0, %s26
    %s20 = sphi 0, %s18
    %s21 = sphi 0, %s19
    %s22 = sphi 0, %s20
    %s23 = sphi 0, %s21
    %s35 = sphi 0, %s37
    %s38 = sphi 0, %s35
    %s39 = sphi 0, %s38
    %s55 = sphi 0, %s39
    %s59 = sphi 0, %s59
    %s61 = sphi 0, %s59
    %s62 = sphi 0, %s61
    %s76 = sphi 0, %s62
    %s84 = sphi 0, %s86
    %s87 = sphi 0, %s84
    %s88 = sphi 0, %s87
    %s104 = sphi 0, %s88
    %s112 = sphi 0, %s114
    %s115 = sphi 0, %s112
    %s116 = sphi 0, %s115
    %s132 = sphi 0, %s116
    %s140 = sphi 0, %s142
    %s143 = sphi 0, %s140
    %s144 = sphi 0, %s143
    %s160 = sphi 0, %s144
  $region4: #{decoder_block.3} parent=0 // loop_header_branch
    %14 = sbr.rel (%p12) target = $region8
  $region5: #{decoder_block.3} parent=0 // loop_body
    %s16 = ssub.s32 %s11, 1
    %s17 = ssub.s32 %s11, 2
    %s24 = sadd.s32 1, %s19
    %p25 = scmp.ge.s32.totalorder %s24, 1
    %s26 = scalar_select %p25, 0, %s24
    %s27 = sadd.s32 1, %s18
    %s28 = scalar_select %p25, %s27, %s18
    %p29 = scmp.ge.s32.totalorder %s28, 2
    %s30 = scalar_select %p29, 0, %s28
    %s31 = ssub.s32 %s18, %s30
    %s32 = ssub.s32 %s19, %s26
    %s33 = sor.u32 %s31, %s32
    %p34 = scmp.eq.s32.totalorder %s33, 0
    %s36 = sadd.s32 %s35, 1
    %s37 = scalar_select %p34, %s35, %s36
    %p40 = pneg %p34
    %p41 = scmp.eq.s32.totalorder %s11, 1
    %p42 = por %p40, %p41
    %p43 = scmp.ne.s32.totalorder %s35, %s38
    %p44 = scmp.eq.s32.totalorder %s11, 0
    %p45 = por %p43, %p44
    %p46 = scmp.ne.s32.totalorder %s35, %s38
    %p47 = scmp.eq.s32.totalorder %s16, 1
    %p48 = por %p46, %p47
    %p49 = scmp.ne.s32.totalorder %s38, %s39
    %p50 = scmp.eq.s32.totalorder %s16, 0
    %p51 = por %p49, %p50
    %p52 = scmp.ne.s32.totalorder %s38, %s39
    %p53 = scmp.eq.s32.totalorder %s17, 1
    %p54 = por %p52, %p53
    %p56 = scmp.ne.s32.totalorder %s39, %s55
    %p57 = scmp.eq.s32.totalorder %s17, 0
    %p58 = por %p56, %p57
    %s60 = sadd.s32 %s59, 1
    %p63 = scmp.eq.s32.totalorder %s11, 1
    %p64 = scmp.ne.s32.totalorder %s59, %s61
    %p65 = scmp.eq.s32.totalorder %s11, 0
    %p66 = por %p64, %p65
    %p67 = scmp.ne.s32.totalorder %s59, %s61
    %p68 = scmp.eq.s32.totalorder %s16, 1
    %p69 = por %p67, %p68
    %p70 = scmp.ne.s32.totalorder %s61, %s62
    %p71 = scmp.eq.s32.totalorder %s16, 0
    %p72 = por %p70, %p71
    %p73 = scmp.ne.s32.totalorder %s61, %s62
    %p74 = scmp.eq.s32.totalorder %s17, 1
    %p75 = por %p73, %p74
    %p77 = scmp.ne.s32.totalorder %s62, %s76
    %p78 = scmp.eq.s32.totalorder %s17, 0
    %p79 = por %p77, %p78
    %s80 = ssub.s32 %s18, %s30
    %s81 = ssub.s32 %s19, %s26
    %s82 = sor.u32 %s80, %s81
    %p83 = scmp.eq.s32.totalorder %s82, 0
    %s85 = sadd.s32 %s84, 1
    %s86 = scalar_select %p83, %s84, %s85
    %p89 = pneg %p83
    %p90 = scmp.eq.s32.totalorder %s11, 1
    %p91 = por %p89, %p90
    %p92 = scmp.ne.s32.totalorder %s84, %s87
    %p93 = scmp.eq.s32.totalorder %s11, 0
    %p94 = por %p92, %p93
    %p95 = scmp.ne.s32.totalorder %s84, %s87
    %p96 = scmp.eq.s32.totalorder %s16, 1
    %p97 = por %p95, %p96
    %p98 = scmp.ne.s32.totalorder %s87, %s88
    %p99 = scmp.eq.s32.totalorder %s16, 0
    %p100 = por %p98, %p99
    %p101 = scmp.ne.s32.totalorder %s87, %s88
    %p102 = scmp.eq.s32.totalorder %s17, 1
    %p103 = por %p101, %p102
    %p105 = scmp.ne.s32.totalorder %s88, %s104
    %p106 = scmp.eq.s32.totalorder %s17, 0
    %p107 = por %p105, %p106
    %s108 = ssub.s32 %s18, %s30
    %s109 = ssub.s32 %s19, %s26
    %s110 = sor.u32 %s108, %s109
    %p111 = scmp.eq.s32.totalorder %s110, 0
    %s113 = sadd.s32 %s112, 1
    %s114 = scalar_select %p111, %s112, %s113
    %p117 = pneg %p111
    %p118 = scmp.eq.s32.totalorder %s11, 1
    %p119 = por %p117, %p118
    %p120 = scmp.ne.s32.totalorder %s112, %s115
    %p121 = scmp.eq.s32.totalorder %s11, 0
    %p122 = por %p120, %p121
    %p123 = scmp.ne.s32.totalorder %s112, %s115
    %p124 = scmp.eq.s32.totalorder %s16, 1
    %p125 = por %p123, %p124
    %p126 = scmp.ne.s32.totalorder %s115, %s116
    %p127 = scmp.eq.s32.totalorder %s16, 0
    %p128 = por %p126, %p127
    %p129 = scmp.ne.s32.totalorder %s115, %s116
    %p130 = scmp.eq.s32.totalorder %s17, 1
    %p131 = por %p129, %p130
    %p133 = scmp.ne.s32.totalorder %s116, %s132
    %p134 = scmp.eq.s32.totalorder %s17, 0
    %p135 = por %p133, %p134
    %s136 = ssub.s32 %s18, %s30
    %s137 = ssub.s32 %s19, %s26
    %s138 = sor.u32 %s136, %s137
    %p139 = scmp.eq.s32.totalorder %s138, 0
    %s141 = sadd.s32 %s140, 1
    %s142 = scalar_select %p139, %s140, %s141
    %p145 = pneg %p139
    %p146 = scmp.eq.s32.totalorder %s11, 1
    %p147 = por %p145, %p146
    %p148 = scmp.ne.s32.totalorder %s140, %s143
    %p149 = scmp.eq.s32.totalorder %s11, 0
    %p150 = por %p148, %p149
    %p151 = scmp.ne.s32.totalorder %s140, %s143
    %p152 = scmp.eq.s32.totalorder %s16, 1
    %p153 = por %p151, %p152
    %p154 = scmp.ne.s32.totalorder %s143, %s144
    %p155 = scmp.eq.s32.totalorder %s16, 0
    %p156 = por %p154, %p155
    %p157 = scmp.ne.s32.totalorder %s143, %s144
    %p158 = scmp.eq.s32.totalorder %s17, 1
    %p159 = por %p157, %p158
    %p161 = scmp.ne.s32.totalorder %s144, %s160
    %p162 = scmp.eq.s32.totalorder %s17, 0
    %p163 = por %p161, %p162
    %p164 = scmp.le.s32.totalorder 1, %s11
    %p165 = scmp.lt.s32.totalorder %s11, 3
    %p166 = pnand %p164, %p165
    %p167 = pneg %p166
    // Predicated region
    $region9: #{decoder_block.3} parent=5 // pred_check
      _
    $region10: #{decoder_block.3} parent=5 // pred_check_branch
      %169 = sbr.rel (%p166) target = $region12
    $region11: #{decoder_block.3} parent=5 // pred_region
      %s170 = ssub.s32 %s11, 1
      // Predicated region
      $region13: #{decoder_block.3} parent=11 // pred_check
        %p171 = pneg %p72
      $region14: #{decoder_block.3} parent=11 // pred_check_branch
        %173 = sbr.rel (%p171) target = $region16
      $region15: #{decoder_block.3} parent=11 // pred_region
        _
      $region16: #{decoder_block.3} parent=11 // pred_fallthru
        _
    $region12: #{decoder_block.3} parent=5 // pred_fallthru
      _
    %p174 = scmp.lt.s32.totalorder %s11, 2
    // Predicated region
    $region17: #{decoder_block.3} parent=5 // pred_check
      %p175 = pneg %p174
    $region18: #{decoder_block.3} parent=5 // pred_check_branch
      %177 = sbr.rel (%p175) target = $region20
    $region19: #{decoder_block.3} parent=5 // pred_region
      // Predicated region
      $region21: #{decoder_block.3} parent=19 // pred_check
        %p178 = pneg %p45
      $region22: #{decoder_block.3} parent=19 // pred_check_branch
        %180 = sbr.rel (%p178) target = $region24
      $region23: #{decoder_block.3} parent=19 // pred_region
        %p181 = scmp.lt.s32.totalorder %s18, 1
        %s182 = scalar_select %p181, %s18, 1
        %p183 = scmp.lt.s32.totalorder %s19, 0
        %s184 = scalar_select %p183, %s19, 0
        %s185 = sadd.s32 %s184, %s182
        %s186 = smul.addr %s185, 8
        %s187 = scalar_lea.vmem %s0, %s186
      $region24: #{decoder_block.3} parent=19 // pred_fallthru
        _
    $region20: #{decoder_block.3} parent=5 // pred_fallthru
      _
    %p188 = scmp.le.s32.totalorder 1, %s11
    %p189 = scmp.lt.s32.totalorder %s11, 3
    %p190 = pnand %p188, %p189
    %p191 = pneg %p190
    // Predicated region
    $region25: #{decoder_block.3} parent=5 // pred_check
      _
    $region26: #{decoder_block.3} parent=5 // pred_check_branch
      %193 = sbr.rel (%p190) target = $region28
    $region27: #{decoder_block.3} parent=5 // pred_region
      %s194 = ssub.s32 %s11, 1
      %p195 = scmp.lt.s32.totalorder %s20, 1
      %s196 = scalar_select %p195, %s20, 1
      %p197 = scmp.lt.s32.totalorder %s21, 0
      %s198 = scalar_select %p197, %s21, 0
      %s199 = sadd.s32 %s198, %s196
      %s200 = smul.addr %s199, 8
      %s201 = scalar_lea.vmem %s0, %s200
      %p202 = pneg %p51
      %p203 = pneg %p48
      %p204 = pneg %p72
      %p205 = pneg %p69
      %p206 = pneg %p100
      %p207 = pneg %p97
      %p208 = scmp.lt.s32.totalorder %s20, 1
      %s209 = scalar_select %p208, %s20, 1
      %p210 = scmp.lt.s32.totalorder %s21, 0
      %s211 = scalar_select %p210, %s21, 0
      %s212 = smul.addr %s209, 4
      %s213 = sadd.s32 %s211, %s212
      %s214 = smul.addr %s213, 8
      %s215 = scalar_lea.vmem %s2, %s214
      %p216 = pneg %p128
      %p217 = pneg %p125
      %p218 = scmp.lt.s32.totalorder %s20, 1
      %s219 = scalar_select %p218, %s20, 1
      %p220 = scmp.lt.s32.totalorder %s21, 0
      %s221 = scalar_select %p220, %s21, 0
      %s222 = smul.addr %s221, 4
      %s223 = smul.addr %s219, 4
      %s224 = sadd.s32 %s222, %s223
      %s225 = smul.addr %s224, 8
      %s226 = scalar_lea.vmem %s3, %s225
      %p227 = pneg %p156
      %p228 = pneg %p153
      %p229 = scmp.lt.s32.totalorder %s20, 1
      %s230 = scalar_select %p229, %s20, 1
      %p231 = scmp.lt.s32.totalorder %s21, 0
      %s232 = scalar_select %p231, %s21, 0
      %s233 = smul.addr %s232, 4
      %s234 = smul.addr %s230, 4
      %s235 = sadd.s32 %s233, %s234
      %s236 = smul.addr %s235, 8
      %s237 = scalar_lea.vmem %s4, %s236
      %p238 = scmp.lt.s32.totalorder %s20, 1
      %s239 = scalar_select %p238, %s20, 1
      %p240 = scmp.lt.s32.totalorder %s21, 0
      %s241 = scalar_select %p240, %s21, 0
      %s242 = sadd.s32 %s241, %s239
      %s243 = smul.addr %s242, 8
      %s244 = scalar_lea.vmem %s0, %s243
      %p245 = scmp.lt.s32.totalorder %s20, 1
      %s246 = scalar_select %p245, %s20, 1
      %p247 = scmp.lt.s32.totalorder %s21, 0
      %s248 = scalar_select %p247, %s21, 0
      %s249 = smul.addr %s246, 4
      %s250 = sadd.s32 %s248, %s249
      %s251 = smul.addr %s250, 8
      %s252 = scalar_lea.vmem %s2, %s251
      %p253 = scmp.lt.s32.totalorder %s20, 1
      %s254 = scalar_select %p253, %s20, 1
      %p255 = scmp.lt.s32.totalorder %s21, 0
      %s256 = scalar_select %p255, %s21, 0
      %s257 = smul.addr %s256, 4
      %s258 = smul.addr %s254, 4
      %s259 = sadd.s32 %s257, %s258
      %s260 = smul.addr %s259, 8
      %s261 = scalar_lea.vmem %s3, %s260
      %p262 = scmp.lt.s32.totalorder %s20, 1
      %s263 = scalar_select %p262, %s20, 1
      %p264 = scmp.lt.s32.totalorder %s21, 0
      %s265 = scalar_select %p264, %s21, 0
      %s266 = smul.addr %s265, 4
      %s267 = smul.addr %s263, 4
      %s268 = sadd.s32 %s266, %s267
      %s269 = smul.addr %s268, 8
      %s270 = scalar_lea.vmem %s4, %s269
      %v271 = vld [vmem:[%s1] sm:$0xff]
      %v272 = vld [vmem:[%s1 + $0x8] sm:$0xff]
      %v273 = vld [vmem:[%s1 + $0x10] sm:$0xff]
      %v274 = vld [vmem:[%s1 + $0x18] sm:$0xff]
      %v275 = vld [vmem:[%s244] sm:$0xff]
      %vm276 = vcmask 64512
      %v278 = vsel %vm276, %v271, 0
      %v281 = vsel %vm276, %v272, 0
      %v284 = vsel %vm276, %v273, 0
      %v287 = vsel %vm276, %v274, 0
      %289 = vmatprep.subr.mxu0 0.0
      %290 = vmatpush1.msra.mxu0 0.0
      %291 = vmatprep.subr.mxu0 0.0
      %292 = vmatpush1.msra.mxu0 0.0
      %293 = vmatprep.subr.mxu0 0.0
      %294 = vmatpush1.msra.mxu0 0.0
      %295 = vmatprep.subr.mxu0 0.0
      %296 = vmatpush1.msra.mxu0 0.0
      %297 = vmatprep.subr.mxu0 0.0
      %298 = vmatpush1.msra.mxu0 0.0
      %299 = vmatprep.subr.mxu0 0.0
      %300 = vmatpush1.msra.mxu0 0.0
      %301 = vmatprep.subr.mxu0 0.0
      %302 = vmatpush1.msra.mxu0 0.0
      %303 = vmatprep.subr.mxu0 0.0
      %304 = vmatpush1.msra.mxu0 0.0
      %305 = vmatprep.subr.mxu0 0.0
      %306 = vmatpush1.msra.mxu0 0.0
      %307 = vmatprep.subr.mxu0 0.0
      %308 = vmatpush1.msra.mxu0 0.0
      %309 = vmatprep.subr.mxu0 0.0
      %310 = vmatpush1.msra.mxu0 0.0
      %311 = vmatprep.subr.mxu0 0.0
      %312 = vmatpush1.msra.mxu0 0.0
      %313 = vmatprep.subr.mxu0 0.0
      %314 = vmatpush1.msra.mxu0 0.0
      %315 = vmatprep.subr.mxu0 0.0
      %316 = vmatpush1.msra.mxu0 0.0
      %317 = vmatprep.subr.mxu0 0.0
      %318 = vmatpush1.msra.mxu0 0.0
      %319 = vmatprep.subr.mxu0 0.0
      %320 = vmatpush1.msra.mxu0 %v275
      %321 = vmatprep.subr.mxu0 0.0
      %322 = vmatpush2.msra.mxu0 0.0
      %323 = vmatprep.subr.mxu0 0.0
      %324 = vmatpush2.msra.mxu0 0.0
      %325 = vmatprep.subr.mxu0 0.0
      %326 = vmatpush2.msra.mxu0 0.0
      %327 = vmatprep.subr.mxu0 0.0
      %328 = vmatpush2.msra.mxu0 0.0
      %329 = vmatprep.subr.mxu0 0.0
      %330 = vmatpush2.msra.mxu0 0.0
      %331 = vmatprep.subr.mxu0 0.0
      %332 = vmatpush2.msra.mxu0 0.0
      %333 = vmatprep.subr.mxu0 0.0
      %334 = vmatpush2.msra.mxu0 0.0
      %335 = vmatprep.subr.mxu0 0.0
      %336 = vmatpush2.msra.mxu0 0.0
      %337 = vmatprep.subr.mxu0 0.0
      %338 = vmatpush2.msra.mxu0 0.0
      %339 = vmatprep.subr.mxu0 0.0
      %340 = vmatpush2.msra.mxu0 0.0
      %341 = vmatprep.subr.mxu0 0.0
      %342 = vmatpush2.msra.mxu0 0.0
      %343 = vmatprep.subr.mxu0 0.0
      %344 = vmatpush2.msra.mxu0 0.0
      %345 = vmatprep.subr.mxu0 0.0
      %346 = vmatpush2.msra.mxu0 0.0
      %347 = vmatprep.subr.mxu0 0.0
      %348 = vmatpush2.msra.mxu0 0.0
      %349 = vmatprep.subr.mxu0 0.0
      %350 = vmatpush2.msra.mxu0 0.0
      %351 = vmatprep.subr.mxu0 0.0
      %352 = vmatpush2.msra.mxu0 0.0
      %353 = vmatprep.mubr.f32.mxu0 0.0
      %354 = vmatmul.mubr.f32.gmra.mxu0 %v278
      %v355 = vpop.f32.mrf.mxu0
      %v356 = vadd.f32 0.0, %v355
      %v357 = vpop.f32.mrf.mxu0
      %358 = vmatprep.mubr.f32.mxu0 0.0
      %359 = vmatmul.mubr.f32.gmra.mxu0 %v281
      %v360 = vpop.f32.mrf.mxu0
      %v361 = vadd.f32 0.0, %v360
      %v362 = vpop.f32.mrf.mxu0
      %363 = vmatprep.mubr.f32.mxu0 0.0
      %364 = vmatmul.mubr.f32.gmra.mxu0 %v284
      %v365 = vpop.f32.mrf.mxu0
      %v366 = vadd.f32 0.0, %v365
      %v367 = vpop.f32.mrf.mxu0
      %368 = vmatprep.mubr.f32.mxu0 0.0
      %369 = vmatmul.mubr.f32.gmra.mxu0 %v287
      %v370 = vpop.f32.mrf.mxu0
      %v371 = vadd.f32 0.0, %v370
      %v372 = vpop.f32.mrf.mxu0
      %373 = vdwg.mxu0
      %vm374 = vcmask 523264
      %375 = vst.msk [vmem:[%s252] sm:$0xff] %vm374, %v356
      %376 = vst.msk [vmem:[%s252 + $0x8] sm:$0xff] %vm374, %v361
      %377 = vst.msk [vmem:[%s252 + $0x10] sm:$0xff] %vm374, %v366
      %378 = vst.msk [vmem:[%s252 + $0x18] sm:$0xff] %vm374, %v371
      %v379 = vsel %vm374, %v356, 0.0
      %380 = vadd.xlane.f32.xlu0 %v379
      %v381 = vpop.xlane.xlu0 %380
      %v382 = vsel %vm374, %v361, 0.0
      %383 = vadd.xlane.f32.xlu0 %v382
      %v384 = vpop.xlane.xlu0 %383
      %v385 = vsel %vm374, %v366, 0.0
      %386 = vadd.xlane.f32.xlu0 %v385
      %v387 = vpop.xlane.xlu0 %386
      %v388 = vsel %vm374, %v371, 0.0
      %389 = vadd.xlane.f32.xlu0 %v388
      %v390 = vpop.xlane.xlu0 %389
      %vm391 = vcmask 7168
      %392 = vst.msk [vmem:[%s261] sm:$0xff] %vm391, %v381
      %393 = vst.msk [vmem:[%s261 + $0x8] sm:$0xff] %vm391, %v384
      %394 = vst.msk [vmem:[%s261 + $0x10] sm:$0xff] %vm391, %v387
      %395 = vst.msk [vmem:[%s261 + $0x18] sm:$0xff] %vm391, %v390
      %v396 = vmul.f32 %v356, %v356
      %v397 = vmul.f32 %v361, %v361
      %v398 = vmul.f32 %v366, %v366
      %v399 = vmul.f32 %v371, %v371
      %v400 = vsel %vm374, %v396, 0.0
      %401 = vadd.xlane.f32.xlu0 %v400
      %v402 = vpop.xlane.xlu0 %401
      %v403 = vsel %vm374, %v397, 0.0
      %404 = vadd.xlane.f32.xlu0 %v403
      %v405 = vpop.xlane.xlu0 %404
      %v406 = vsel %vm374, %v398, 0.0
      %407 = vadd.xlane.f32.xlu0 %v406
      %v408 = vpop.xlane.xlu0 %407
      %v409 = vsel %vm374, %v399, 0.0
      %410 = vadd.xlane.f32.xlu0 %v409
      %v411 = vpop.xlane.xlu0 %410
      %412 = vst.msk [vmem:[%s270] sm:$0xff] %vm391, %v402
      %413 = vst.msk [vmem:[%s270 + $0x8] sm:$0xff] %vm391, %v405
      %414 = vst.msk [vmem:[%s270 + $0x10] sm:$0xff] %vm391, %v408
      %415 = vst.msk [vmem:[%s270 + $0x18] sm:$0xff] %vm391, %v411
      %p416 = scmp.lt.s32.totalorder %s20, 1
      %s417 = scalar_select %p416, %s20, 1
      %p418 = scmp.lt.s32.totalorder %s21, 0
      %s419 = scalar_select %p418, %s21, 0
      %s420 = smul.addr %s417, 4
      %s421 = sadd.s32 %s419, %s420
      %s422 = smul.addr %s421, 8
      %s423 = scalar_lea.vmem %s2, %s422
      %p424 = scmp.lt.s32.totalorder %s20, 1
      %s425 = scalar_select %p424, %s20, 1
      %p426 = scmp.lt.s32.totalorder %s21, 0
      %s427 = scalar_select %p426, %s21, 0
      %s428 = smul.addr %s427, 4
      %s429 = smul.addr %s425, 4
      %s430 = sadd.s32 %s428, %s429
      %s431 = smul.addr %s430, 8
      %s432 = scalar_lea.vmem %s3, %s431
      %p433 = scmp.lt.s32.totalorder %s20, 1
      %s434 = scalar_select %p433, %s20, 1
      %p435 = scmp.lt.s32.totalorder %s21, 0
      %s436 = scalar_select %p435, %s21, 0
      %s437 = smul.addr %s436, 4
      %s438 = smul.addr %s434, 4
      %s439 = sadd.s32 %s437, %s438
      %s440 = smul.addr %s439, 8
      %s441 = scalar_lea.vmem %s4, %s440
      // Predicated region
      $region29: #{decoder_block.3} parent=27 // pred_check
        %p442 = pneg %p97
      $region30: #{decoder_block.3} parent=27 // pred_check_branch
        %444 = sbr.rel (%p442) target = $region32
      $region31: #{decoder_block.3} parent=27 // pred_region
        _
      $region32: #{decoder_block.3} parent=27 // pred_fallthru
        _
      // Predicated region
      $region33: #{decoder_block.3} parent=27 // pred_check
        %p445 = pneg %p125
      $region34: #{decoder_block.3} parent=27 // pred_check_branch
        %447 = sbr.rel (%p445) target = $region36
      $region35: #{decoder_block.3} parent=27 // pred_region
        _
      $region36: #{decoder_block.3} parent=27 // pred_fallthru
        _
      // Predicated region
      $region37: #{decoder_block.3} parent=27 // pred_check
        %p448 = pneg %p153
      $region38: #{decoder_block.3} parent=27 // pred_check_branch
        %450 = sbr.rel (%p448) target = $region40
      $region39: #{decoder_block.3} parent=27 // pred_region
        _
      $region40: #{decoder_block.3} parent=27 // pred_fallthru
        _
    $region28: #{decoder_block.3} parent=5 // pred_fallthru
      _
    %p451 = scmp.le.s32.totalorder 2, %s11
    // Predicated region
    $region41: #{decoder_block.3} parent=5 // pred_check
      %p452 = pneg %p451
    $region42: #{decoder_block.3} parent=5 // pred_check_branch
      %454 = sbr.rel (%p452) target = $region44
    $region43: #{decoder_block.3} parent=5 // pred_region
      %s455 = ssub.s32 %s11, 2
      // Predicated region
      $region45: #{decoder_block.3} parent=43 // pred_check
        %p456 = pneg %p103
      $region46: #{decoder_block.3} parent=43 // pred_check_branch
        %458 = sbr.rel (%p456) target = $region48
      $region47: #{decoder_block.3} parent=43 // pred_region
        %p459 = scmp.lt.s32.totalorder %s22, 1
        %s460 = scalar_select %p459, %s22, 1
        %p461 = scmp.lt.s32.totalorder %s23, 0
        %s462 = scalar_select %p461, %s23, 0
        %s463 = smul.addr %s460, 4
        %s464 = sadd.s32 %s462, %s463
        %s465 = smul.addr %s464, 8
        %s466 = scalar_lea.vmem %s2, %s465
      $region48: #{decoder_block.3} parent=43 // pred_fallthru
        _
      // Predicated region
      $region49: #{decoder_block.3} parent=43 // pred_check
        %p467 = pneg %p131
      $region50: #{decoder_block.3} parent=43 // pred_check_branch
        %469 = sbr.rel (%p467) target = $region52
      $region51: #{decoder_block.3} parent=43 // pred_region
        %p470 = scmp.lt.s32.totalorder %s22, 1
        %s471 = scalar_select %p470, %s22, 1
        %p472 = scmp.lt.s32.totalorder %s23, 0
        %s473 = scalar_select %p472, %s23, 0
        %s474 = smul.addr %s473, 4
        %s475 = smul.addr %s471, 4
        %s476 = sadd.s32 %s474, %s475
        %s477 = smul.addr %s476, 8
        %s478 = scalar_lea.vmem %s3, %s477
      $region52: #{decoder_block.3} parent=43 // pred_fallthru
        _
      // Predicated region
      $region53: #{decoder_block.3} parent=43 // pred_check
        %p479 = pneg %p159
      $region54: #{decoder_block.3} parent=43 // pred_check_branch
        %481 = sbr.rel (%p479) target = $region56
      $region55: #{decoder_block.3} parent=43 // pred_region
        %p482 = scmp.lt.s32.totalorder %s22, 1
        %s483 = scalar_select %p482, %s22, 1
        %p484 = scmp.lt.s32.totalorder %s23, 0
        %s485 = scalar_select %p484, %s23, 0
        %s486 = smul.addr %s485, 4
        %s487 = smul.addr %s483, 4
        %s488 = sadd.s32 %s486, %s487
        %s489 = smul.addr %s488, 8
        %s490 = scalar_lea.vmem %s4, %s489
      $region56: #{decoder_block.3} parent=43 // pred_fallthru
        _
    $region44: #{decoder_block.3} parent=5 // pred_fallthru
      _
  $region6: #{decoder_block.3} parent=0 // loop_footer
    %s15 = sadd.s32 1, %s11
  $region7: #{decoder_block.3} parent=0 // loop_footer_branch
    %10 = sbr.rel target = $region3
  $region8: #{decoder_block.3} parent=0 // loop_exit
    _

// kernel: decoder_block.5
$region0: #{decoder_block.5}
  #allocation0 [shape = 'u32[]', space=smem, size = 0x4, offset = 0x4, fixed_abs, tag = 'smem constant byte address 0x4 - core index']
  #allocation1 [shape = 'u32[144,128]{1,0:T(1,128)}', space=vmem, size = 0x12000, scoped, tag = 'internal scratch']
  %s0 = inlined_call_operand.vmem [shape: f32[2,8,4,64], index: 0, kind: input, shape index: {}]
  %s1 = inlined_call_operand.vmem [shape: f32[2,4,1], index: 1, kind: input, shape index: {}]
  %s2 = inlined_call_operand.vmem [shape: f32[2,4,1], index: 2, kind: input, shape index: {}]
  %s3 = inlined_call_operand.vmem [shape: f32[2,8,4,64], index: 3, kind: output, shape index: {}]
  %s4 = sld [smem:[#allocation0]]
  $region45: #{decoder_block.5} parent=0
    _
  %s6 = ssub.s32 1, %s4
  %s7 = scalar_select 0, %s6, %s4
  loop: start=0, step=1, limit=18
  $region2: #{decoder_block.5} parent=0 // loop_pre_header
    _
  $region3: #{decoder_block.5} parent=0 // loop_header
    %s9 = sphi 0, %s13
    %p10 = scmp.ge.s32.totalorder %s9, 18
    %s16 = sphi 0, %s28
    %s17 = sphi 0, %s24
    %s18 = sphi 0, %s16
    %s19 = sphi 0, %s17
    %s20 = sphi 0, %s18
    %s21 = sphi 0, %s19
    %s33 = sphi 0, %s35
    %s36 = sphi 0, %s33
    %s37 = sphi 0, %s36
    %s53 = sphi 0, %s37
    %s59 = sphi 0, %s61
    %s62 = sphi 0, %s59
    %s63 = sphi 0, %s62
    %s79 = sphi 0, %s63
    %s85 = sphi 0, %s87
    %s88 = sphi 0, %s85
    %s89 = sphi 0, %s88
    %s105 = sphi 0, %s89
    %s113 = sphi 0, %s115
    %s116 = sphi 0, %s113
    %s117 = sphi 0, %s116
    %s133 = sphi 0, %s117
  $region4: #{decoder_block.5} parent=0 // loop_header_branch
    %12 = sbr.rel (%p10) target = $region8
  $region5: #{decoder_block.5} parent=0 // loop_body
    %s14 = ssub.s32 %s9, 1
    %s15 = ssub.s32 %s9, 2
    %s22 = sadd.s32 1, %s17
    %p23 = scmp.ge.s32.totalorder %s22, 8
    %s24 = scalar_select %p23, 0, %s22
    %s25 = sadd.s32 1, %s16
    %s26 = scalar_select %p23, %s25, %s16
    %p27 = scmp.ge.s32.totalorder %s26, 2
    %s28 = scalar_select %p27, 0, %s26
    %s29 = ssub.s32 %s16, %s28
    %s30 = ssub.s32 %s17, %s24
    %s31 = sor.u32 %s29, %s30
    %p32 = scmp.eq.s32.totalorder %s31, 0
    %s34 = sadd.s32 %s33, 1
    %s35 = scalar_select %p32, %s33, %s34
    %p38 = pneg %p32
    %p39 = scmp.eq.s32.totalorder %s9, 15
    %p40 = por %p38, %p39
    %p41 = scmp.ne.s32.totalorder %s33, %s36
    %p42 = scmp.eq.s32.totalorder %s9, 0
    %p43 = por %p41, %p42
    %p44 = scmp.ne.s32.totalorder %s33, %s36
    %p45 = scmp.eq.s32.totalorder %s14, 15
    %p46 = por %p44, %p45
    %p47 = scmp.ne.s32.totalorder %s36, %s37
    %p48 = scmp.eq.s32.totalorder %s14, 0
    %p49 = por %p47, %p48
    %p50 = scmp.ne.s32.totalorder %s36, %s37
    %p51 = scmp.eq.s32.totalorder %s15, 15
    %p52 = por %p50, %p51
    %p54 = scmp.ne.s32.totalorder %s37, %s53
    %p55 = scmp.eq.s32.totalorder %s15, 0
    %p56 = por %p54, %p55
    %s57 = ssub.s32 %s16, %s28
    %p58 = scmp.eq.s32.totalorder %s57, 0
    %s60 = sadd.s32 %s59, 1
    %s61 = scalar_select %p58, %s59, %s60
    %p64 = pneg %p58
    %p65 = scmp.eq.s32.totalorder %s9, 15
    %p66 = por %p64, %p65
    %p67 = scmp.ne.s32.totalorder %s59, %s62
    %p68 = scmp.eq.s32.totalorder %s9, 0
    %p69 = por %p67, %p68
    %p70 = scmp.ne.s32.totalorder %s59, %s62
    %p71 = scmp.eq.s32.totalorder %s14, 15
    %p72 = por %p70, %p71
    %p73 = scmp.ne.s32.totalorder %s62, %s63
    %p74 = scmp.eq.s32.totalorder %s14, 0
    %p75 = por %p73, %p74
    %p76 = scmp.ne.s32.totalorder %s62, %s63
    %p77 = scmp.eq.s32.totalorder %s15, 15
    %p78 = por %p76, %p77
    %p80 = scmp.ne.s32.totalorder %s63, %s79
    %p81 = scmp.eq.s32.totalorder %s15, 0
    %p82 = por %p80, %p81
    %s83 = ssub.s32 %s16, %s28
    %p84 = scmp.eq.s32.totalorder %s83, 0
    %s86 = sadd.s32 %s85, 1
    %s87 = scalar_select %p84, %s85, %s86
    %p90 = pneg %p84
    %p91 = scmp.eq.s32.totalorder %s9, 15
    %p92 = por %p90, %p91
    %p93 = scmp.ne.s32.totalorder %s85, %s88
    %p94 = scmp.eq.s32.totalorder %s9, 0
    %p95 = por %p93, %p94
    %p96 = scmp.ne.s32.totalorder %s85, %s88
    %p97 = scmp.eq.s32.totalorder %s14, 15
    %p98 = por %p96, %p97
    %p99 = scmp.ne.s32.totalorder %s88, %s89
    %p100 = scmp.eq.s32.totalorder %s14, 0
    %p101 = por %p99, %p100
    %p102 = scmp.ne.s32.totalorder %s88, %s89
    %p103 = scmp.eq.s32.totalorder %s15, 15
    %p104 = por %p102, %p103
    %p106 = scmp.ne.s32.totalorder %s89, %s105
    %p107 = scmp.eq.s32.totalorder %s15, 0
    %p108 = por %p106, %p107
    %s109 = ssub.s32 %s16, %s28
    %s110 = ssub.s32 %s17, %s24
    %s111 = sor.u32 %s109, %s110
    %p112 = scmp.eq.s32.totalorder %s111, 0
    %s114 = sadd.s32 %s113, 1
    %s115 = scalar_select %p112, %s113, %s114
    %p118 = pneg %p112
    %p119 = scmp.eq.s32.totalorder %s9, 15
    %p120 = por %p118, %p119
    %p121 = scmp.ne.s32.totalorder %s113, %s116
    %p122 = scmp.eq.s32.totalorder %s9, 0
    %p123 = por %p121, %p122
    %p124 = scmp.ne.s32.totalorder %s113, %s116
    %p125 = scmp.eq.s32.totalorder %s14, 15
    %p126 = por %p124, %p125
    %p127 = scmp.ne.s32.totalorder %s116, %s117
    %p128 = scmp.eq.s32.totalorder %s14, 0
    %p129 = por %p127, %p128
    %p130 = scmp.ne.s32.totalorder %s116, %s117
    %p131 = scmp.eq.s32.totalorder %s15, 15
    %p132 = por %p130, %p131
    %p134 = scmp.ne.s32.totalorder %s117, %s133
    %p135 = scmp.eq.s32.totalorder %s15, 0
    %p136 = por %p134, %p135
    %p137 = scmp.le.s32.totalorder 1, %s9
    %p138 = scmp.lt.s32.totalorder %s9, 17
    %p139 = pnand %p137, %p138
    %p140 = pneg %p139
    // Predicated region
    $region9: #{decoder_block.5} parent=5 // pred_check
      _
    $region10: #{decoder_block.5} parent=5 // pred_check_branch
      %142 = sbr.rel (%p139) target = $region12
    $region11: #{decoder_block.5} parent=5 // pred_region
      %s143 = ssub.s32 %s9, 1
    $region12: #{decoder_block.5} parent=5 // pred_fallthru
      _
    %p144 = scmp.lt.s32.totalorder %s9, 16
    // Predicated region
    $region13: #{decoder_block.5} parent=5 // pred_check
      %p145 = pneg %p144
    $region14: #{decoder_block.5} parent=5 // pred_check_branch
      %147 = sbr.rel (%p145) target = $region16
    $region15: #{decoder_block.5} parent=5 // pred_region
      // Predicated region
      $region17: #{decoder_block.5} parent=15 // pred_check
        %p148 = pneg %p43
      $region18: #{decoder_block.5} parent=15 // pred_check_branch
        %150 = sbr.rel (%p148) target = $region20
      $region19: #{decoder_block.5} parent=15 // pred_region
        %p151 = scmp.lt.s32.totalorder %s16, 1
        %s152 = scalar_select %p151, %s16, 1
        %p153 = scmp.lt.s32.totalorder %s17, 7
        %s154 = scalar_select %p153, %s17, 7
        %s155 = smul.addr %s152, 8
        %s156 = sadd.s32 %s154, %s155
        %s157 = smul.addr %s156, 4
        %s158 = scalar_lea.vmem %s0, %s157
      $region20: #{decoder_block.5} parent=15 // pred_fallthru
        _
      // Predicated region
      $region21: #{decoder_block.5} parent=15 // pred_check
        %p159 = pneg %p69
      $region22: #{decoder_block.5} parent=15 // pred_check_branch
        %161 = sbr.rel (%p159) target = $region24
      $region23: #{decoder_block.5} parent=15 // pred_region
        %p162 = scmp.lt.s32.totalorder %s16, 1
        %s163 = scalar_select %p162, %s16, 1
        %s164 = smul.addr %s163, 4
        %s165 = scalar_lea.vmem %s1, %s164
      $region24: #{decoder_block.5} parent=15 // pred_fallthru
        _
      // Predicated region
      $region25: #{decoder_block.5} parent=15 // pred_check
        %p166 = pneg %p95
      $region26: #{decoder_block.5} parent=15 // pred_check_branch
        %168 = sbr.rel (%p166) target = $region28
      $region27: #{decoder_block.5} parent=15 // pred_region
        %p169 = scmp.lt.s32.totalorder %s16, 1
        %s170 = scalar_select %p169, %s16, 1
        %s171 = smul.addr %s170, 4
        %s172 = scalar_lea.vmem %s2, %s171
      $region28: #{decoder_block.5} parent=15 // pred_fallthru
        _
    $region16: #{decoder_block.5} parent=5 // pred_fallthru
      _
    %p173 = scmp.le.s32.totalorder 1, %s9
    %p174 = scmp.lt.s32.totalorder %s9, 17
    %p175 = pnand %p173, %p174
    %p176 = pneg %p175
    // Predicated region
    $region29: #{decoder_block.5} parent=5 // pred_check
      _
    $region30: #{decoder_block.5} parent=5 // pred_check_branch
      %178 = sbr.rel (%p175) target = $region32
    $region31: #{decoder_block.5} parent=5 // pred_region
      %s179 = ssub.s32 %s9, 1
      %p180 = scmp.lt.s32.totalorder %s18, 1
      %s181 = scalar_select %p180, %s18, 1
      %p182 = scmp.lt.s32.totalorder %s19, 7
      %s183 = scalar_select %p182, %s19, 7
      %s184 = smul.addr %s181, 8
      %s185 = sadd.s32 %s183, %s184
      %s186 = smul.addr %s185, 4
      %s187 = scalar_lea.vmem %s0, %s186
      %p188 = pneg %p49
      %p189 = pneg %p46
      %p190 = scmp.lt.s32.totalorder %s18, 1
      %s191 = scalar_select %p190, %s18, 1
      %s192 = smul.addr %s191, 4
      %s193 = scalar_lea.vmem %s1, %s192
      %p194 = pneg %p75
      %p195 = pneg %p72
      %p196 = scmp.lt.s32.totalorder %s18, 1
      %s197 = scalar_select %p196, %s18, 1
      %s198 = smul.addr %s197, 4
      %s199 = scalar_lea.vmem %s2, %s198
      %p200 = pneg %p101
      %p201 = pneg %p98
      %p202 = pneg %p129
      %p203 = pneg %p126
      %p204 = scmp.lt.s32.totalorder %s18, 1
      %s205 = scalar_select %p204, %s18, 1
      %p206 = scmp.lt.s32.totalorder %s19, 7
      %s207 = scalar_select %p206, %s19, 7
      %s208 = smul.addr %s205, 8
      %s209 = sadd.s32 %s207, %s208
      %s210 = smul.addr %s209, 4
      %s211 = scalar_lea.vmem %s3, %s210
      %p212 = scmp.lt.s32.totalorder %s18, 1
      %s213 = scalar_select %p212, %s18, 1
      %p214 = scmp.lt.s32.totalorder %s19, 7
      %s215 = scalar_select %p214, %s19, 7
      %s216 = smul.addr %s213, 8
      %s217 = sadd.s32 %s215, %s216
      %s218 = smul.addr %s217, 4
      %s219 = scalar_lea.vmem %s0, %s218
      %p220 = scmp.lt.s32.totalorder %s18, 1
      %s221 = scalar_select %p220, %s18, 1
      %s222 = smul.addr %s221, 4
      %s223 = scalar_lea.vmem %s1, %s222
      %p224 = scmp.lt.s32.totalorder %s18, 1
      %s225 = scalar_select %p224, %s18, 1
      %s226 = smul.addr %s225, 4
      %s227 = scalar_lea.vmem %s2, %s226
      %p228 = scmp.lt.s32.totalorder %s18, 1
      %s229 = scalar_select %p228, %s18, 1
      %p230 = scmp.lt.s32.totalorder %s19, 7
      %s231 = scalar_select %p230, %s19, 7
      %s232 = smul.addr %s229, 8
      %s233 = sadd.s32 %s231, %s232
      %s234 = smul.addr %s233, 4
      %s235 = scalar_lea.vmem %s3, %s234
      %v236 = vld [vmem:[%s219] sm:$0xf]
      %v237 = vld [vmem:[%s223] sm:$0xf]
      %239 = vset.pattern.permute.xlu0 0
      %240 = vperm.xlu0 %239, %v237
      %v241 = vpop.permute.xlu0 %240
      %v243 = vsub.f32 %v236, %v241
      %v244 = vld [vmem:[%s227] sm:$0xf]
      %246 = vset.pattern.permute.xlu0 0
      %247 = vperm.xlu0 %246, %v244
      %v248 = vpop.permute.xlu0 %247
      %v250 = vmul.f32 %v243, %v248
      %vm251 = vcmp.ge.f32.partialorder %v250, 0.0
      %v252 = vmul.f32 %v250, 0.01
      %v253 = vsel %vm251, %v250, %v252
      %vm254 = vcmask 519168
      %255 = vst.msk [vmem:[%s235] sm:$0xf] %vm254, %v253
      %p256 = scmp.lt.s32.totalorder %s18, 1
      %s257 = scalar_select %p256, %s18, 1
      %p258 = scmp.lt.s32.totalorder %s19, 7
      %s259 = scalar_select %p258, %s19, 7
      %s260 = smul.addr %s257, 8
      %s261 = sadd.s32 %s259, %s260
      %s262 = smul.addr %s261, 4
      %s263 = scalar_lea.vmem %s3, %s262
      // Predicated region
      $region33: #{decoder_block.5} parent=31 // pred_check
        %p264 = pneg %p126
      $region34: #{decoder_block.5} parent=31 // pred_check_branch
        %266 = sbr.rel (%p264) target = $region36
      $region35: #{decoder_block.5} parent=31 // pred_region
        _
      $region36: #{decoder_block.5} parent=31 // pred_fallthru
        _
    $region32: #{decoder_block.5} parent=5 // pred_fallthru
      _
    %p267 = scmp.le.s32.totalorder 2, %s9
    // Predicated region
    $region37: #{decoder_block.5} parent=5 // pred_check
      %p268 = pneg %p267
    $region38: #{decoder_block.5} parent=5 // pred_check_branch
      %270 = sbr.rel (%p268) target = $region40
    $region39: #{decoder_block.5} parent=5 // pred_region
      %s271 = ssub.s32 %s9, 2
      // Predicated region
      $region41: #{decoder_block.5} parent=39 // pred_check
        %p272 = pneg %p132
      $region42: #{decoder_block.5} parent=39 // pred_check_branch
        %274 = sbr.rel (%p272) target = $region44
      $region43: #{decoder_block.5} parent=39 // pred_region
        %p275 = scmp.lt.s32.totalorder %s20, 1
        %s276 = scalar_select %p275, %s20, 1
        %p277 = scmp.lt.s32.totalorder %s21, 7
        %s278 = scalar_select %p277, %s21, 7
        %s279 = smul.addr %s276, 8
        %s280 = sadd.s32 %s278, %s279
        %s281 = smul.addr %s280, 4
        %s282 = scalar_lea.vmem %s3, %s281
      $region44: #{decoder_block.5} parent=39 // pred_fallthru
        _
    $region40: #{decoder_block.5} parent=5 // pred_fallthru
      _
  $region6: #{decoder_block.5} parent=0 // loop_footer
    %s13 = sadd.s32 1, %s9
  $region7: #{decoder_block.5} parent=0 // loop_footer_branch
    %8 = sbr.rel target = $region3
  $region8: #{decoder_block.5} parent=0 // loop_exit
    _

// kernel: decoder_block.4
$region0: #{decoder_block.4}
  #allocation0 [shape = 'u32[]', space=smem, size = 0x4, offset = 0x4, fixed_abs, tag = 'smem constant byte address 0x4 - core index']
  #allocation1 [shape = 'u32[144,128]{1,0:T(1,128)}', space=vmem, size = 0x12000, scoped, tag = 'internal scratch']
  %s0 = inlined_call_operand.vmem [shape: f32[2,10,4,82], index: 0, kind: input, shape index: {}, may-alias: {0,1,2}]
  %s1 = inlined_call_operand.vmem [shape: f32[2,10,4,82], index: 1, kind: input, shape index: {}, may-alias: {0,1,2}]
  %s2 = inlined_call_operand.vmem [shape: f32[2,10,4,82], index: 2, kind: input, shape index: {}, may-alias: {0,1,2}]
  %s3 = inlined_call_operand.vmem [shape: f32[4,108], index: 3, kind: input, shape index: {}]
  %s4 = inlined_call_operand.vmem [shape: f32[2,4,1], index: 4, kind: input, shape index: {}]
  %s5 = inlined_call_operand.vmem [shape: f32[2,4,1], index: 5, kind: input, shape index: {}]
  %s6 = inlined_call_operand.vmem [shape: f32[9,1,64], index: 6, kind: input, shape index: {}]
  %s7 = inlined_call_operand.vmem [shape: f32[2,8,4,64], index: 7, kind: output, shape index: {0}]
  %s8 = inlined_call_operand.vmem [shape: f32[2,8,4,1], index: 8, kind: output, shape index: {1}]
  %s9 = inlined_call_operand.vmem [shape: f32[2,8,4,1], index: 9, kind: output, shape index: {2}]
  %10 = xla_tuple %s7, %s8, %s9
  %s11 = sld [smem:[#allocation0]]
  $region77: #{decoder_block.4} parent=0
    _
  %s13 = ssub.s32 1, %s11
  %s14 = scalar_select 0, %s13, %s11
  loop: start=0, step=1, limit=18
  $region2: #{decoder_block.4} parent=0 // loop_pre_header
    _
  $region3: #{decoder_block.4} parent=0 // loop_header
    %s16 = sphi 0, %s20
    %p17 = scmp.ge.s32.totalorder %s16, 18
    %s23 = sphi 0, %s35
    %s24 = sphi 0, %s31
    %s25 = sphi 0, %s23
    %s26 = sphi 0, %s24
    %s27 = sphi 0, %s25
    %s28 = sphi 0, %s26
    %s40 = sphi 0, %s42
    %s43 = sphi 0, %s40
    %s44 = sphi 0, %s43
    %s60 = sphi 0, %s44
    %s70 = sphi 0, %s72
    %s73 = sphi 0, %s70
    %s74 = sphi 0, %s73
    %s90 = sphi 0, %s74
    %s100 = sphi 0, %s102
    %s103 = sphi 0, %s100
    %s104 = sphi 0, %s103
    %s120 = sphi 0, %s104
    %s124 = sphi 0, %s124
    %s126 = sphi 0, %s124
    %s127 = sphi 0, %s126
    %s141 = sphi 0, %s127
    %s147 = sphi 0, %s149
    %s150 = sphi 0, %s147
    %s151 = sphi 0, %s150
    %s167 = sphi 0, %s151
    %s173 = sphi 0, %s175
    %s176 = sphi 0, %s173
    %s177 = sphi 0, %s176
    %s193 = sphi 0, %s177
    %s197 = sphi 0, %s197
    %s199 = sphi 0, %s197
    %s200 = sphi 0, %s199
    %s214 = sphi 0, %s200
    %s222 = sphi 0, %s224
    %s225 = sphi 0, %s222
    %s226 = sphi 0, %s225
    %s242 = sphi 0, %s226
    %s250 = sphi 0, %s252
    %s253 = sphi 0, %s250
    %s254 = sphi 0, %s253
    %s270 = sphi 0, %s254
    %s278 = sphi 0, %s280
    %s281 = sphi 0, %s278
    %s282 = sphi 0, %s281
    %s298 = sphi 0, %s282
  $region4: #{decoder_block.4} parent=0 // loop_header_branch
    %19 = sbr.rel (%p17) target = $region8
  $region5: #{decoder_block.4} parent=0 // loop_body
    %s21 = ssub.s32 %s16, 1
    %s22 = ssub.s32 %s16, 2
    %s29 = sadd.s32 1, %s24
    %p30 = scmp.ge.s32.totalorder %s29, 8
    %s31 = scalar_select %p30, 0, %s29
    %s32 = sadd.s32 1, %s23
    %s33 = scalar_select %p30, %s32, %s23
    %p34 = scmp.ge.s32.totalorder %s33, 2
    %s35 = scalar_select %p34, 0, %s33
    %s36 = ssub.s32 %s23, %s35
    %s37 = ssub.s32 %s24, %s31
    %s38 = sor.u32 %s36, %s37
    %p39 = scmp.eq.s32.totalorder %s38, 0
    %s41 = sadd.s32 %s40, 1
    %s42 = scalar_select %p39, %s40, %s41
    %p45 = pneg %p39
    %p46 = scmp.eq.s32.totalorder %s16, 15
    %p47 = por %p45, %p46
    %p48 = scmp.ne.s32.totalorder %s40, %s43
    %p49 = scmp.eq.s32.totalorder %s16, 0
    %p50 = por %p48, %p49
    %p51 = scmp.ne.s32.totalorder %s40, %s43
    %p52 = scmp.eq.s32.totalorder %s21, 15
    %p53 = por %p51, %p52
    %p54 = scmp.ne.s32.totalorder %s43, %s44
    %p55 = scmp.eq.s32.totalorder %s21, 0
    %p56 = por %p54, %p55
    %p57 = scmp.ne.s32.totalorder %s43, %s44
    %p58 = scmp.eq.s32.totalorder %s22, 15
    %p59 = por %p57, %p58
    %p61 = scmp.ne.s32.totalorder %s44, %s60
    %p62 = scmp.eq.s32.totalorder %s22, 0
    %p63 = por %p61, %p62
    %s64 = sadd.s32 %s24, 1
    %s65 = sadd.s32 %s31, 1
    %s66 = ssub.s32 %s23, %s35
    %s67 = ssub.s32 %s64, %s65
    %s68 = sor.u32 %s66, %s67
    %p69 = scmp.eq.s32.totalorder %s68, 0
    %s71 = sadd.s32 %s70, 1
    %s72 = scalar_select %p69, %s70, %s71
    %p75 = pneg %p69
    %p76 = scmp.eq.s32.totalorder %s16, 15
    %p77 = por %p75, %p76
    %p78 = scmp.ne.s32.totalorder %s70, %s73
    %p79 = scmp.eq.s32.totalorder %s16, 0
    %p80 = por %p78, %p79
    %p81 = scmp.ne.s32.totalorder %s70, %s73
    %p82 = scmp.eq.s32.totalorder %s21, 15
    %p83 = por %p81, %p82
    %p84 = scmp.ne.s32.totalorder %s73, %s74
    %p85 = scmp.eq.s32.totalorder %s21, 0
    %p86 = por %p84, %p85
    %p87 = scmp.ne.s32.totalorder %s73, %s74
    %p88 = scmp.eq.s32.totalorder %s22, 15
    %p89 = por %p87, %p88
    %p91 = scmp.ne.s32.totalorder %s74, %s90
    %p92 = scmp.eq.s32.totalorder %s22, 0
    %p93 = por %p91, %p92
    %s94 = sadd.s32 %s24, 2
    %s95 = sadd.s32 %s31, 2
    %s96 = ssub.s32 %s23, %s35
    %s97 = ssub.s32 %s94, %s95
    %s98 = sor.u32 %s96, %s97
    %p99 = scmp.eq.s32.totalorder %s98, 0
    %s101 = sadd.s32 %s100, 1
    %s102 = scalar_select %p99, %s100, %s101
    %p105 = pneg %p99
    %p106 = scmp.eq.s32.totalorder %s16, 15
    %p107 = por %p105, %p106
    %p108 = scmp.ne.s32.totalorder %s100, %s103
    %p109 = scmp.eq.s32.totalorder %s16, 0
    %p110 = por %p108, %p109
    %p111 = scmp.ne.s32.totalorder %s100, %s103
    %p112 = scmp.eq.s32.totalorder %s21, 15
    %p113 = por %p111, %p112
    %p114 = scmp.ne.s32.totalorder %s103, %s104
    %p115 = scmp.eq.s32.totalorder %s21, 0
    %p116 = por %p114, %p115
    %p117 = scmp.ne.s32.totalorder %s103, %s104
    %p118 = scmp.eq.s32.totalorder %s22, 15
    %p119 = por %p117, %p118
    %p121 = scmp.ne.s32.totalorder %s104, %s120
    %p122 = scmp.eq.s32.totalorder %s22, 0
    %p123 = por %p121, %p122
    %s125 = sadd.s32 %s124, 1
    %p128 = scmp.eq.s32.totalorder %s16, 15
    %p129 = scmp.ne.s32.totalorder %s124, %s126
    %p130 = scmp.eq.s32.totalorder %s16, 0
    %p131 = por %p129, %p130
    %p132 = scmp.ne.s32.totalorder %s124, %s126
    %p133 = scmp.eq.s32.totalorder %s21, 15
    %p134 = por %p132, %p133
    %p135 = scmp.ne.s32.totalorder %s126, %s127
    %p136 = scmp.eq.s32.totalorder %s21, 0
    %p137 = por %p135, %p136
    %p138 = scmp.ne.s32.totalorder %s126, %s127
    %p139 = scmp.eq.s32.totalorder %s22, 15
    %p140 = por %p138, %p139
    %p142 = scmp.ne.s32.totalorder %s127, %s141
    %p143 = scmp.eq.s32.totalorder %s22, 0
    %p144 = por %p142, %p143
    %s145 = ssub.s32 %s23, %s35
    %p146 = scmp.eq.s32.totalorder %s145, 0
    %s148 = sadd.s32 %s147, 1
    %s149 = scalar_select %p146, %s147, %s148
    %p152 = pneg %p146
    %p153 = scmp.eq.s32.totalorder %s16, 15
    %p154 = por %p152, %p153
    %p155 = scmp.ne.s32.totalorder %s147, %s150
    %p156 = scmp.eq.s32.totalorder %s16, 0
    %p157 = por %p155, %p156
    %p158 = scmp.ne.s32.totalorder %s147, %s150
    %p159 = scmp.eq.s32.totalorder %s21, 15
    %p160 = por %p158, %p159
    %p161 = scmp.ne.s32.totalorder %s150, %s151
    %p162 = scmp.eq.s32.totalorder %s21, 0
    %p163 = por %p161, %p162
    %p164 = scmp.ne.s32.totalorder %s150, %s151
    %p165 = scmp.eq.s32.totalorder %s22, 15
    %p166 = por %p164, %p165
    %p168 = scmp.ne.s32.totalorder %s151, %s167
    %p169 = scmp.eq.s32.totalorder %s22, 0
    %p170 = por %p168, %p169
    %s171 = ssub.s32 %s23, %s35
    %p172 = scmp.eq.s32.totalorder %s171, 0
    %s174 = sadd.s32 %s173, 1
    %s175 = scalar_select %p172, %s173, %s174
    %p178 = pneg %p172
    %p179 = scmp.eq.s32.totalorder %s16, 15
    %p180 = por %p178, %p179
    %p181 = scmp.ne.s32.totalorder %s173, %s176
    %p182 = scmp.eq.s32.totalorder %s16, 0
    %p183 = por %p181, %p182
    %p184 = scmp.ne.s32.totalorder %s173, %s176
    %p185 = scmp.eq.s32.totalorder %s21, 15
    %p186 = por %p184, %p185
    %p187 = scmp.ne.s32.totalorder %s176, %s177
    %p188 = scmp.eq.s32.totalorder %s21, 0
    %p189 = por %p187, %p188
    %p190 = scmp.ne.s32.totalorder %s176, %s177
    %p191 = scmp.eq.s32.totalorder %s22, 15
    %p192 = por %p190, %p191
    %p194 = scmp.ne.s32.totalorder %s177, %s193
    %p195 = scmp.eq.s32.totalorder %s22, 0
    %p196 = por %p194, %p195
    %s198 = sadd.s32 %s197, 1
    %p201 = scmp.eq.s32.totalorder %s16, 15
    %p202 = scmp.ne.s32.totalorder %s197, %s199
    %p203 = scmp.eq.s32.totalorder %s16, 0
    %p204 = por %p202, %p203
    %p205 = scmp.ne.s32.totalorder %s197, %s199
    %p206 = scmp.eq.s32.totalorder %s21, 15
    %p207 = por %p205, %p206
    %p208 = scmp.ne.s32.totalorder %s199, %s200
    %p209 = scmp.eq.s32.totalorder %s21, 0
    %p210 = por %p208, %p209
    %p211 = scmp.ne.s32.totalorder %s199, %s200
    %p212 = scmp.eq.s32.totalorder %s22, 15
    %p213 = por %p211, %p212
    %p215 = scmp.ne.s32.totalorder %s200, %s214
    %p216 = scmp.eq.s32.totalorder %s22, 0
    %p217 = por %p215, %p216
    %s218 = ssub.s32 %s23, %s35
    %s219 = ssub.s32 %s24, %s31
    %s220 = sor.u32 %s218, %s219
    %p221 = scmp.eq.s32.totalorder %s220, 0
    %s223 = sadd.s32 %s222, 1
    %s224 = scalar_select %p221, %s222, %s223
    %p227 = pneg %p221
    %p228 = scmp.eq.s32.totalorder %s16, 15
    %p229 = por %p227, %p228
    %p230 = scmp.ne.s32.totalorder %s222, %s225
    %p231 = scmp.eq.s32.totalorder %s16, 0
    %p232 = por %p230, %p231
    %p233 = scmp.ne.s32.totalorder %s222, %s225
    %p234 = scmp.eq.s32.totalorder %s21, 15
    %p235 = por %p233, %p234
    %p236 = scmp.ne.s32.totalorder %s225, %s226
    %p237 = scmp.eq.s32.totalorder %s21, 0
    %p238 = por %p236, %p237
    %p239 = scmp.ne.s32.totalorder %s225, %s226
    %p240 = scmp.eq.s32.totalorder %s22, 15
    %p241 = por %p239, %p240
    %p243 = scmp.ne.s32.totalorder %s226, %s242
    %p244 = scmp.eq.s32.totalorder %s22, 0
    %p245 = por %p243, %p244
    %s246 = ssub.s32 %s23, %s35
    %s247 = ssub.s32 %s24, %s31
    %s248 = sor.u32 %s246, %s247
    %p249 = scmp.eq.s32.totalorder %s248, 0
    %s251 = sadd.s32 %s250, 1
    %s252 = scalar_select %p249, %s250, %s251
    %p255 = pneg %p249
    %p256 = scmp.eq.s32.totalorder %s16, 15
    %p257 = por %p255, %p256
    %p258 = scmp.ne.s32.totalorder %s250, %s253
    %p259 = scmp.eq.s32.totalorder %s16, 0
    %p260 = por %p258, %p259
    %p261 = scmp.ne.s32.totalorder %s250, %s253
    %p262 = scmp.eq.s32.totalorder %s21, 15
    %p263 = por %p261, %p262
    %p264 = scmp.ne.s32.totalorder %s253, %s254
    %p265 = scmp.eq.s32.totalorder %s21, 0
    %p266 = por %p264, %p265
    %p267 = scmp.ne.s32.totalorder %s253, %s254
    %p268 = scmp.eq.s32.totalorder %s22, 15
    %p269 = por %p267, %p268
    %p271 = scmp.ne.s32.totalorder %s254, %s270
    %p272 = scmp.eq.s32.totalorder %s22, 0
    %p273 = por %p271, %p272
    %s274 = ssub.s32 %s23, %s35
    %s275 = ssub.s32 %s24, %s31
    %s276 = sor.u32 %s274, %s275
    %p277 = scmp.eq.s32.totalorder %s276, 0
    %s279 = sadd.s32 %s278, 1
    %s280 = scalar_select %p277, %s278, %s279
    %p283 = pneg %p277
    %p284 = scmp.eq.s32.totalorder %s16, 15
    %p285 = por %p283, %p284
    %p286 = scmp.ne.s32.totalorder %s278, %s281
    %p287 = scmp.eq.s32.totalorder %s16, 0
    %p288 = por %p286, %p287
    %p289 = scmp.ne.s32.totalorder %s278, %s281
    %p290 = scmp.eq.s32.totalorder %s21, 15
    %p291 = por %p289, %p290
    %p292 = scmp.ne.s32.totalorder %s281, %s282
    %p293 = scmp.eq.s32.totalorder %s21, 0
    %p294 = por %p292, %p293
    %p295 = scmp.ne.s32.totalorder %s281, %s282
    %p296 = scmp.eq.s32.totalorder %s22, 15
    %p297 = por %p295, %p296
    %p299 = scmp.ne.s32.totalorder %s282, %s298
    %p300 = scmp.eq.s32.totalorder %s22, 0
    %p301 = por %p299, %p300
    %p302 = scmp.le.s32.totalorder 1, %s16
    %p303 = scmp.lt.s32.totalorder %s16, 17
    %p304 = pnand %p302, %p303
    %p305 = pneg %p304
    // Predicated region
    $region9: #{decoder_block.4} parent=5 // pred_check
      _
    $region10: #{decoder_block.4} parent=5 // pred_check_branch
      %307 = sbr.rel (%p304) target = $region12
    $region11: #{decoder_block.4} parent=5 // pred_region
      %s308 = ssub.s32 %s16, 1
      // Predicated region
      $region13: #{decoder_block.4} parent=11 // pred_check
        %p309 = pneg %p137
      $region14: #{decoder_block.4} parent=11 // pred_check_branch
        %311 = sbr.rel (%p309) target = $region16
      $region15: #{decoder_block.4} parent=11 // pred_region
        _
      $region16: #{decoder_block.4} parent=11 // pred_fallthru
        _
      // Predicated region
      $region17: #{decoder_block.4} parent=11 // pred_check
        %p312 = pneg %p210
      $region18: #{decoder_block.4} parent=11 // pred_check_branch
        %314 = sbr.rel (%p312) target = $region20
      $region19: #{decoder_block.4} parent=11 // pred_region
        _
      $region20: #{decoder_block.4} parent=11 // pred_fallthru
        _
    $region12: #{decoder_block.4} parent=5 // pred_fallthru
      _
    %p315 = scmp.lt.s32.totalorder %s16, 16
    // Predicated region
    $region21: #{decoder_block.4} parent=5 // pred_check
      %p316 = pneg %p315
    $region22: #{decoder_block.4} parent=5 // pred_check_branch
      %318 = sbr.rel (%p316) target = $region24
    $region23: #{decoder_block.4} parent=5 // pred_region
      // Predicated region
      $region25: #{decoder_block.4} parent=23 // pred_check
        %p319 = pneg %p50
      $region26: #{decoder_block.4} parent=23 // pred_check_branch
        %321 = sbr.rel (%p319) target = $region28
      $region27: #{decoder_block.4} parent=23 // pred_region
        %p322 = scmp.lt.s32.totalorder %s23, 1
        %s323 = scalar_select %p322, %s23, 1
        %p324 = scmp.lt.s32.totalorder %s24, 9
        %s325 = scalar_select %p324, %s24, 9
        %s326 = smul.addr %s323, 10
        %s327 = sadd.s32 %s325, %s326
        %s328 = smul.addr %s327, 4
        %s329 = scalar_lea.vmem %s0, %s328
      $region28: #{decoder_block.4} parent=23 // pred_fallthru
        _
      // Predicated region
      $region29: #{decoder_block.4} parent=23 // pred_check
        %p330 = pneg %p80
      $region30: #{decoder_block.4} parent=23 // pred_check_branch
        %332 = sbr.rel (%p330) target = $region32
      $region31: #{decoder_block.4} parent=23 // pred_region
        %s333 = sadd.s32 %s24, 1
        %p334 = scmp.lt.s32.totalorder %s23, 1
        %s335 = scalar_select %p334, %s23, 1
        %p336 = scmp.lt.s32.totalorder %s333, 9
        %s337 = scalar_select %p336, %s333, 9
        %s338 = smul.addr %s335, 10
        %s339 = sadd.s32 %s337, %s338
        %s340 = smul.addr %s339, 4
        %s341 = scalar_lea.vmem %s1, %s340
        %s342 = sadd.s32 %s24, 1
      $region32: #{decoder_block.4} parent=23 // pred_fallthru
        _
      // Predicated region
      $region33: #{decoder_block.4} parent=23 // pred_check
        %p343 = pneg %p110
      $region34: #{decoder_block.4} parent=23 // pred_check_branch
        %345 = sbr.rel (%p343) target = $region36
      $region35: #{decoder_block.4} parent=23 // pred_region
        %s346 = sadd.s32 %s24, 2
        %p347 = scmp.lt.s32.totalorder %s23, 1
        %s348 = scalar_select %p347, %s23, 1
        %p349 = scmp.lt.s32.totalorder %s346, 9
        %s350 = scalar_select %p349, %s346, 9
        %s351 = smul.addr %s348, 10
        %s352 = sadd.s32 %s350, %s351
        %s353 = smul.addr %s352, 4
        %s354 = scalar_lea.vmem %s2, %s353
        %s355 = sadd.s32 %s24, 2
      $region36: #{decoder_block.4} parent=23 // pred_fallthru
        _
      // Predicated region
      $region37: #{decoder_block.4} parent=23 // pred_check
        %p356 = pneg %p157
      $region38: #{decoder_block.4} parent=23 // pred_check_branch
        %358 = sbr.rel (%p356) target = $region40
      $region39: #{decoder_block.4} parent=23 // pred_region
        %p359 = scmp.lt.s32.totalorder %s23, 1
        %s360 = scalar_select %p359, %s23, 1
        %s361 = smul.addr %s360, 4
        %s362 = scalar_lea.vmem %s4, %s361
      $region40: #{decoder_block.4} parent=23 // pred_fallthru
        _
      // Predicated region
      $region41: #{decoder_block.4} parent=23 // pred_check
        %p363 = pneg %p183
      $region42: #{decoder_block.4} parent=23 // pred_check_branch
        %365 = sbr.rel (%p363) target = $region44
      $region43: #{decoder_block.4} parent=23 // pred_region
        %p366 = scmp.lt.s32.totalorder %s23, 1
        %s367 = scalar_select %p366, %s23, 1
        %s368 = smul.addr %s367, 4
        %s369 = scalar_lea.vmem %s5, %s368
      $region44: #{decoder_block.4} parent=23 // pred_fallthru
        _
    $region24: #{decoder_block.4} parent=5 // pred_fallthru
      _
    %p370 = scmp.le.s32.totalorder 1, %s16
    %p371 = scmp.lt.s32.totalorder %s16, 17
    %p372 = pnand %p370, %p371
    %p373 = pneg %p372
    // Predicated region
    $region45: #{decoder_block.4} parent=5 // pred_check
      _
    $region46: #{decoder_block.4} parent=5 // pred_check_branch
      %375 = sbr.rel (%p372) target = $region48
    $region47: #{decoder_block.4} parent=5 // pred_region
      %s376 = ssub.s32 %s16, 1
      %p377 = scmp.lt.s32.totalorder %s25, 1
      %s378 = scalar_select %p377, %s25, 1
      %p379 = scmp.lt.s32.totalorder %s26, 9
      %s380 = scalar_select %p379, %s26, 9
      %s381 = smul.addr %s378, 10
      %s382 = sadd.s32 %s380, %s381
      %s383 = smul.addr %s382, 4
      %s384 = scalar_lea.vmem %s0, %s383
      %p385 = pneg %p56
      %p386 = pneg %p53
      %s387 = sadd.s32 %s26, 1
      %p388 = scmp.lt.s32.totalorder %s25, 1
      %s389 = scalar_select %p388, %s25, 1
      %p390 = scmp.lt.s32.totalorder %s387, 9
      %s391 = scalar_select %p390, %s387, 9
      %s392 = smul.addr %s389, 10
      %s393 = sadd.s32 %s391, %s392
      %s394 = smul.addr %s393, 4
      %s395 = scalar_lea.vmem %s1, %s394
      %p396 = pneg %p86
      %p397 = pneg %p83
      %s398 = sadd.s32 %s26, 2
      %p399 = scmp.lt.s32.totalorder %s25, 1
      %s400 = scalar_select %p399, %s25, 1
      %p401 = scmp.lt.s32.totalorder %s398, 9
      %s402 = scalar_select %p401, %s398, 9
      %s403 = smul.addr %s400, 10
      %s404 = sadd.s32 %s402, %s403
      %s405 = smul.addr %s404, 4
      %s406 = scalar_lea.vmem %s2, %s405
      %p407 = pneg %p116
      %p408 = pneg %p113
      %p409 = pneg %p137
      %p410 = pneg %p134
      %p411 = scmp.lt.s32.totalorder %s25, 1
      %s412 = scalar_select %p411, %s25, 1
      %s413 = smul.addr %s412, 4
      %s414 = scalar_lea.vmem %s4, %s413
      %p415 = pneg %p163
      %p416 = pneg %p160
      %p417 = scmp.lt.s32.totalorder %s25, 1
      %s418 = scalar_select %p417, %s25, 1
      %s419 = smul.addr %s418, 4
      %s420 = scalar_lea.vmem %s5, %s419
      %p421 = pneg %p189
      %p422 = pneg %p186
      %p423 = pneg %p210
      %p424 = pneg %p207
      %p425 = pneg %p238
      %p426 = pneg %p235
      %p427 = scmp.lt.s32.totalorder %s25, 1
      %s428 = scalar_select %p427, %s25, 1
      %p429 = scmp.lt.s32.totalorder %s26, 7
      %s430 = scalar_select %p429, %s26, 7
      %s431 = smul.addr %s428, 8
      %s432 = sadd.s32 %s430, %s431
      %s433 = smul.addr %s432, 4
      %s434 = scalar_lea.vmem %s7, %s433
      %p435 = pneg %p266
      %p436 = pneg %p263
      %p437 = scmp.lt.s32.totalorder %s25, 1
      %s438 = scalar_select %p437, %s25, 1
      %p439 = scmp.lt.s32.totalorder %s26, 7
      %s440 = scalar_select %p439, %s26, 7
      %s441 = smul.addr %s438, 8
      %s442 = sadd.s32 %s440, %s441
      %s443 = smul.addr %s442, 4
      %s444 = scalar_lea.vmem %s8, %s443
      %p445 = pneg %p294
      %p446 = pneg %p291
      %p447 = scmp.lt.s32.totalorder %s25, 1
      %s448 = scalar_select %p447, %s25, 1
      %p449 = scmp.lt.s32.totalorder %s26, 7
      %s450 = scalar_select %p449, %s26, 7
      %s451 = smul.addr %s448, 8
      %s452 = sadd.s32 %s450, %s451
      %s453 = smul.addr %s452, 4
      %s454 = scalar_lea.vmem %s9, %s453
      %p455 = scmp.lt.s32.totalorder %s25, 1
      %s456 = scalar_select %p455, %s25, 1
      %p457 = scmp.lt.s32.totalorder %s26, 9
      %s458 = scalar_select %p457, %s26, 9
      %s459 = smul.addr %s456, 10
      %s460 = sadd.s32 %s458, %s459
      %s461 = smul.addr %s460, 4
      %s462 = scalar_lea.vmem %s0, %s461
      %s463 = sadd.s32 %s26, 1
      %p464 = scmp.lt.s32.totalorder %s25, 1
      %s465 = scalar_select %p464, %s25, 1
      %p466 = scmp.lt.s32.totalorder %s463, 9
      %s467 = scalar_select %p466, %s463, 9
      %s468 = smul.addr %s465, 10
      %s469 = sadd.s32 %s467, %s468
      %s470 = smul.addr %s469, 4
      %s471 = scalar_lea.vmem %s1, %s470
      %s472 = sadd.s32 %s26, 1
      %s473 = sadd.s32 %s26, 2
      %p474 = scmp.lt.s32.totalorder %s25, 1
      %s475 = scalar_select %p474, %s25, 1
      %p476 = scmp.lt.s32.totalorder %s473, 9
      %s477 = scalar_select %p476, %s473, 9
      %s478 = smul.addr %s475, 10
      %s479 = sadd.s32 %s477, %s478
      %s480 = smul.addr %s479, 4
      %s481 = scalar_lea.vmem %s2, %s480
      %s482 = sadd.s32 %s26, 2
      %p483 = scmp.lt.s32.totalorder %s25, 1
      %s484 = scalar_select %p483, %s25, 1
      %s485 = smul.addr %s484, 4
      %s486 = scalar_lea.vmem %s4, %s485
      %p487 = scmp.lt.s32.totalorder %s25, 1
      %s488 = scalar_select %p487, %s25, 1
      %s489 = smul.addr %s488, 4
      %s490 = scalar_lea.vmem %s5, %s489
      %p491 = scmp.lt.s32.totalorder %s25, 1
      %s492 = scalar_select %p491, %s25, 1
      %p493 = scmp.lt.s32.totalorder %s26, 7
      %s494 = scalar_select %p493, %s26, 7
      %s495 = smul.addr %s492, 8
      %s496 = sadd.s32 %s494, %s495
      %s497 = smul.addr %s496, 4
      %s498 = scalar_lea.vmem %s7, %s497
      %p499 = scmp.lt.s32.totalorder %s25, 1
      %s500 = scalar_select %p499, %s25, 1
      %p501 = scmp.lt.s32.totalorder %s26, 7
      %s502 = scalar_select %p501, %s26, 7
      %s503 = smul.addr %s500, 8
      %s504 = sadd.s32 %s502, %s503
      %s505 = smul.addr %s504, 4
      %s506 = scalar_lea.vmem %s8, %s505
      %p507 = scmp.lt.s32.totalorder %s25, 1
      %s508 = scalar_select %p507, %s25, 1
      %p509 = scmp.lt.s32.totalorder %s26, 7
      %s510 = scalar_select %p509, %s26, 7
      %s511 = smul.addr %s508, 8
      %s512 = sadd.s32 %s510, %s511
      %s513 = smul.addr %s512, 4
      %s514 = scalar_lea.vmem %s9, %s513
      %v515 = vld [vmem:[%s486] sm:$0xf]
      %v516 = vld [vmem:[%s490] sm:$0xf]
      %v517 = vld [vmem:[%s462] sm:$0xf]
      %519 = vset.pattern.permute.xlu0 0
      %520 = vperm.xlu0 %519, %v515
      %v521 = vpop.permute.xlu0 %520
      %v523 = vsub.f32 %v517, %v521
      %525 = vset.pattern.permute.xlu0 0
      %526 = vperm.xlu0 %525, %v516
      %v527 = vpop.permute.xlu0 %526
      %v529 = vmul.f32 %v523, %v527
      %vm530 = vcmp.ge.f32.partialorder %v529, 0.0
      %v531 = vmul.f32 %v529, 0.01
      %v532 = vsel %vm530, %v529, %v531
      %p533 = scmp.ge.s32.totalorder %s26, 1
      %p534 = scmp.le.s32.totalorder %s26, 8
      %p535 = pnand %p533, %p534
      %p536 = pneg %p535
      %s537 = scalar_select %p536, 1, 0
      %s538 = scvt.s32.f32 %s537
      %v539 = vstv %s538
      %v540 = vmul.f32 %v532, %v539
      %v541 = vld [vmem:[%s6] sm:$0x1]
      %v543 = vlaneseq
      %v544 = vshrl.u32 %v543, 7
      %v545 = vsub.s32 0, %v544
      %v546 = vrot.slane %v541, %v545
      %v548 = vmul.f32 %v540, %v546
      %s549 = scalar_lea.vmem %s6, 1
      %v550 = vld [vmem:[%s549] sm:$0x1]
      %v552 = vlaneseq
      %v553 = vshrl.u32 %v552, 7
      %v554 = vsub.s32 0, %v553
      %v555 = vrot.slane %v550, %v554
      %556 = vrot.lane.b32.xlu0 %v555, 1
      %v557 = vpop.permute.xlu0 %556
      %v559 = vmul.f32 %v540, %v557
      %s560 = scalar_lea.vmem %s6, 2
      %v561 = vld [vmem:[%s560] sm:$0x1]
      %v563 = vlaneseq
      %v564 = vshrl.u32 %v563, 7
      %v565 = vsub.s32 0, %v564
      %v566 = vrot.slane %v561, %v565
      %567 = vrot.lane.b32.xlu0 %v566, 2
      %v568 = vpop.permute.xlu0 %567
      %v570 = vmul.f32 %v540, %v568
      %s571 = scalar_lea.vmem %s6, 3
      %v572 = vld [vmem:[%s571] sm:$0x1]
      %v574 = vlaneseq
      %v575 = vshrl.u32 %v574, 7
      %v576 = vsub.s32 0, %v575
      %v577 = vrot.slane %v572, %v576
      %578 = vrot.lane.b32.xlu0 %v577, 8
      %v579 = vpop.permute.xlu0 %578
      %v581 = vmul.f32 %v540, %v579
      %s582 = scalar_lea.vmem %s6, 4
      %v583 = vld [vmem:[%s582] sm:$0x1]
      %v585 = vlaneseq
      %v586 = vshrl.u32 %v585, 7
      %v587 = vsub.s32 0, %v586
      %v588 = vrot.slane %v583, %v587
      %589 = vrot.lane.b32.xlu0 %v588, 9
      %v590 = vpop.permute.xlu0 %589
      %v592 = vmul.f32 %v540, %v590
      %s593 = scalar_lea.vmem %s6, 5
      %v594 = vld [vmem:[%s593] sm:$0x1]
      %v596 = vlaneseq
      %v597 = vshrl.u32 %v596, 7
      %v598 = vsub.s32 0, %v597
      %v599 = vrot.slane %v594, %v598
      %600 = vrot.lane.b32.xlu0 %v599, 10
      %v601 = vpop.permute.xlu0 %600
      %v603 = vmul.f32 %v540, %v601
      %s604 = scalar_lea.vmem %s6, 6
      %v605 = vld [vmem:[%s604] sm:$0x1]
      %v607 = vlaneseq
      %v608 = vshrl.u32 %v607, 7
      %v609 = vsub.s32 0, %v608
      %v610 = vrot.slane %v605, %v609
      %611 = vrot.lane.b32.xlu0 %v610, 16
      %v612 = vpop.permute.xlu0 %611
      %v614 = vmul.f32 %v540, %v612
      %s615 = scalar_lea.vmem %s6, 7
      %v616 = vld [vmem:[%s615] sm:$0x1]
      %v618 = vlaneseq
      %v619 = vshrl.u32 %v618, 7
      %v620 = vsub.s32 0, %v619
      %v621 = vrot.slane %v616, %v620
      %622 = vrot.lane.b32.xlu0 %v621, 17
      %v623 = vpop.permute.xlu0 %622
      %v625 = vmul.f32 %v540, %v623
      %s626 = scalar_lea.vmem %s6, 8
      %v627 = vld [vmem:[%s626] sm:$0x1]
      %v629 = vlaneseq
      %v630 = vshrl.u32 %v629, 7
      %v631 = vsub.s32 0, %v630
      %v632 = vrot.slane %v627, %v631
      %633 = vrot.lane.b32.xlu0 %v632, 18
      %v634 = vpop.permute.xlu0 %633
      %v636 = vmul.f32 %v540, %v634
      %v637 = vld [vmem:[%s471] sm:$0xf]
      %v638 = vsub.f32 %v637, %v521
      %v639 = vmul.f32 %v638, %v527
      %vm640 = vcmp.ge.f32.partialorder %v639, 0.0
      %v641 = vmul.f32 %v639, 0.01
      %v642 = vsel %vm640, %v639, %v641
      %s643 = sadd.s32 %s26, 1
      %p644 = scmp.ge.s32.totalorder %s643, 1
      %p645 = scmp.le.s32.totalorder %s643, 8
      %p646 = pnand %p644, %p645
      %p647 = pneg %p646
      %s648 = scalar_select %p647, 1, 0
      %s649 = scvt.s32.f32 %s648
      %v650 = vstv %s649
      %v651 = vmul.f32 %v642, %v650
      %v652 = vmul.f32 %v651, %v546
      %v653 = vmul.f32 %v651, %v557
      %v654 = vmul.f32 %v651, %v568
      %v655 = vmul.f32 %v651, %v579
      %v656 = vmul.f32 %v651, %v590
      %v657 = vmul.f32 %v651, %v601
      %v658 = vmul.f32 %v651, %v612
      %v659 = vmul.f32 %v651, %v623
      %v660 = vmul.f32 %v651, %v634
      %v661 = vld [vmem:[%s481] sm:$0xf]
      %v662 = vsub.f32 %v661, %v521
      %v663 = vmul.f32 %v662, %v527
      %vm664 = vcmp.ge.f32.partialorder %v663, 0.0
      %v665 = vmul.f32 %v663, 0.01
      %v666 = vsel %vm664, %v663, %v665
      %s667 = sadd.s32 %s26, 2
      %p668 = scmp.ge.s32.totalorder %s667, 1
      %p669 = scmp.le.s32.totalorder %s667, 8
      %p670 = pnand %p668, %p669
      %p671 = pneg %p670
      %s672 = scalar_select %p671, 1, 0
      %s673 = scvt.s32.f32 %s672
      %v674 = vstv %s673
      %v675 = vmul.f32 %v666, %v674
      %v676 = vmul.f32 %v675, %v546
      %v677 = vmul.f32 %v675, %v557
      %v678 = vmul.f32 %v675, %v568
      %v679 = vmul.f32 %v675, %v579
      %v680 = vmul.f32 %v675, %v590
      %v681 = vmul.f32 %v675, %v601
      %v682 = vmul.f32 %v675, %v612
      %v683 = vmul.f32 %v675, %v623
      %v684 = vmul.f32 %v675, %v634
      %v686 = vrot.slane %v559, 4
      %687 = vrot.lane.b32.xlu0 %v686, 127
      %v688 = vpop.permute.xlu0 %687
      %691 = vrot.lane.b32.xlu0 %v570, 126
      %v692 = vpop.permute.xlu0 %691
      %v695 = vrot.slane %v581, 4
      %696 = vrot.lane.b32.xlu0 %v695, 120
      %v697 = vpop.permute.xlu0 %696
      %700 = vrot.lane.b32.xlu0 %v592, 119
      %v701 = vpop.permute.xlu0 %700
      %v704 = vrot.slane %v603, 4
      %705 = vrot.lane.b32.xlu0 %v704, 118
      %v706 = vpop.permute.xlu0 %705
      %709 = vrot.lane.b32.xlu0 %v614, 112
      %v710 = vpop.permute.xlu0 %709
      %v713 = vrot.slane %v625, 4
      %714 = vrot.lane.b32.xlu0 %v713, 111
      %v715 = vpop.permute.xlu0 %714
      %718 = vrot.lane.b32.xlu0 %v636, 110
      %v719 = vpop.permute.xlu0 %718
      %v722 = vrot.slane %v652, 4
      %725 = vrot.lane.b32.xlu0 %v653, 127
      %v726 = vpop.permute.xlu0 %725
      %v729 = vrot.slane %v654, 4
      %730 = vrot.lane.b32.xlu0 %v729, 126
      %v731 = vpop.permute.xlu0 %730
      %734 = vrot.lane.b32.xlu0 %v655, 120
      %v735 = vpop.permute.xlu0 %734
      %v738 = vrot.slane %v656, 4
      %739 = vrot.lane.b32.xlu0 %v738, 119
      %v740 = vpop.permute.xlu0 %739
      %743 = vrot.lane.b32.xlu0 %v657, 118
      %v744 = vpop.permute.xlu0 %743
      %v747 = vrot.slane %v658, 4
      %748 = vrot.lane.b32.xlu0 %v747, 112
      %v749 = vpop.permute.xlu0 %748
      %vm751 = vcmask 1043456
      %v752 = vsel %vm751, %v548, %v688
      %v753 = vsel %vm751, %v692, %v697
      %v754 = vsel %vm751, %v701, %v706
      %v755 = vsel %vm751, %v710, %v715
      %v756 = vsel %vm751, %v719, %v722
      %v757 = vsel %vm751, %v726, %v731
      %v758 = vsel %vm751, %v735, %v740
      %v759 = vsel %vm751, %v744, %v749
      %v761 = vrot.slane %v660, 4
      %762 = vrot.lane.b32.xlu0 %v761, 127
      %v763 = vpop.permute.xlu0 %762
      %766 = vrot.lane.b32.xlu0 %v676, 17
      %v767 = vpop.permute.xlu0 %766
      %v770 = vrot.slane %v677, 4
      %771 = vrot.lane.b32.xlu0 %v770, 16
      %v772 = vpop.permute.xlu0 %771
      %775 = vrot.lane.b32.xlu0 %v678, 15
      %v776 = vpop.permute.xlu0 %775
      %v779 = vrot.slane %v679, 4
      %780 = vrot.lane.b32.xlu0 %v779, 9
      %v781 = vpop.permute.xlu0 %780
      %784 = vrot.lane.b32.xlu0 %v680, 8
      %v785 = vpop.permute.xlu0 %784
      %v788 = vrot.slane %v681, 4
      %789 = vrot.lane.b32.xlu0 %v788, 7
      %v790 = vpop.permute.xlu0 %789
      %793 = vrot.lane.b32.xlu0 %v682, 1
      %v794 = vpop.permute.xlu0 %793
      %v797 = vrot.slane %v683, 4
      %800 = vrot.lane.b32.xlu0 %v684, 127
      %v801 = vpop.permute.xlu0 %800
      %v802 = vsel %vm751, %v659, %v763
      %v803 = vsel %vm751, %v767, %v772
      %v804 = vsel %vm751, %v776, %v781
      %v805 = vsel %vm751, %v785, %v790
      %v806 = vsel %vm751, %v794, %v797
      %812 = vrot.lane.b32.xlu0 %v802, 111
      %v813 = vpop.permute.xlu0 %812
      %814 = vrot.lane.b32.xlu0 %v803, 111
      %v815 = vpop.permute.xlu0 %814
      %816 = vrot.lane.b32.xlu0 %v804, 111
      %v817 = vpop.permute.xlu0 %816
      %818 = vrot.lane.b32.xlu0 %v805, 111
      %v819 = vpop.permute.xlu0 %818
      %820 = vrot.lane.b32.xlu0 %v806, 111
      %v821 = vpop.permute.xlu0 %820
      %822 = vrot.lane.b32.xlu0 %v801, 111
      %v823 = vpop.permute.xlu0 %822
      %v829 = vld [vmem:[%s3] sm:$0xf]
      %vm830 = vcmask 883712
      %v832 = vsel %vm830, %v829, 0
      %v834 = vsel %vm751, %v823, 0
      %836 = vmatprep.subr.mxu0 0.0
      %837 = vmatpush1.msra.mxu0 0.0
      %838 = vmatprep.subr.mxu0 0.0
      %839 = vmatpush1.msra.mxu0 0.0
      %840 = vmatprep.subr.mxu0 0.0
      %841 = vmatpush1.msra.mxu0 %v834
      %842 = vmatprep.subr.mxu0 0.0
      %843 = vmatpush1.msra.mxu0 %v821
      %844 = vmatprep.subr.mxu0 0.0
      %845 = vmatpush1.msra.mxu0 %v819
      %846 = vmatprep.subr.mxu0 0.0
      %847 = vmatpush1.msra.mxu0 %v817
      %848 = vmatprep.subr.mxu0 0.0
      %849 = vmatpush1.msra.mxu0 %v815
      %850 = vmatprep.subr.mxu0 0.0
      %851 = vmatpush1.msra.mxu0 %v813
      %852 = vmatprep.subr.mxu0 0.0
      %853 = vmatpush1.msra.mxu0 %v759
      %854 = vmatprep.subr.mxu0 0.0
      %855 = vmatpush1.msra.mxu0 %v758
      %856 = vmatprep.subr.mxu0 0.0
      %857 = vmatpush1.msra.mxu0 %v757
      %858 = vmatprep.subr.mxu0 0.0
      %859 = vmatpush1.msra.mxu0 %v756
      %860 = vmatprep.subr.mxu0 0.0
      %861 = vmatpush1.msra.mxu0 %v755
      %862 = vmatprep.subr.mxu0 0.0
      %863 = vmatpush1.msra.mxu0 %v754
      %864 = vmatprep.subr.mxu0 0.0
      %865 = vmatpush1.msra.mxu0 %v753
      %866 = vmatprep.subr.mxu0 0.0
      %867 = vmatpush1.msra.mxu0 %v752
      %868 = vmatprep.subr.mxu0 0.0
      %869 = vmatpush2.msra.mxu0 0.0
      %870 = vmatprep.subr.mxu0 0.0
      %871 = vmatpush2.msra.mxu0 0.0
      %872 = vmatprep.subr.mxu0 0.0
      %873 = vmatpush2.msra.mxu0 0.0
      %874 = vmatprep.subr.mxu0 0.0
      %875 = vmatpush2.msra.mxu0 0.0
      %876 = vmatprep.subr.mxu0 0.0
      %877 = vmatpush2.msra.mxu0 0.0
      %878 = vmatprep.subr.mxu0 0.0
      %879 = vmatpush2.msra.mxu0 0.0
      %880 = vmatprep.subr.mxu0 0.0
      %881 = vmatpush2.msra.mxu0 0.0
      %882 = vmatprep.subr.mxu0 0.0
      %883 = vmatpush2.msra.mxu0 0.0
      %884 = vmatprep.subr.mxu0 0.0
      %885 = vmatpush2.msra.mxu0 0.0
      %886 = vmatprep.subr.mxu0 0.0
      %887 = vmatpush2.msra.mxu0 0.0
      %888 = vmatprep.subr.mxu0 0.0
      %889 = vmatpush2.msra.mxu0 0.0
      %890 = vmatprep.subr.mxu0 0.0
      %891 = vmatpush2.msra.mxu0 0.0
      %892 = vmatprep.subr.mxu0 0.0
      %893 = vmatpush2.msra.mxu0 0.0
      %894 = vmatprep.subr.mxu0 0.0
      %895 = vmatpush2.msra.mxu0 0.0
      %896 = vmatprep.subr.mxu0 0.0
      %897 = vmatpush2.msra.mxu0 0.0
      %898 = vmatprep.subr.mxu0 0.0
      %899 = vmatpush2.msra.mxu0 0.0
      %900 = vmatprep.mubr.f32.mxu0 0.0
      %901 = vmatmul.mubr.f32.gmra.mxu0 %v832
      %v902 = vpop.f32.mrf.mxu0
      %v903 = vadd.f32 0.0, %v902
      %v904 = vpop.f32.mrf.mxu0
      %905 = vdwg.mxu0
      %vm906 = vcmask 519168
      %907 = vst.msk [vmem:[%s498] sm:$0xf] %vm906, %v903
      %v908 = vsel %vm906, %v903, 0.0
      %909 = vadd.xlane.f32.xlu0 %v908
      %v910 = vpop.xlane.xlu0 %909
      %vm911 = vcmask 3072
      %912 = vst.msk [vmem:[%s506] sm:$0xf] %vm911, %v910
      %v913 = vmul.f32 %v903, %v903
      %v914 = vsel %vm906, %v913, 0.0
      %915 = vadd.xlane.f32.xlu0 %v914
      %v916 = vpop.xlane.xlu0 %915
      %917 = vst.msk [vmem:[%s514] sm:$0xf] %vm911, %v916
      %p918 = scmp.lt.s32.totalorder %s25, 1
      %s919 = scalar_select %p918, %s25, 1
      %p920 = scmp.lt.s32.totalorder %s26, 7
      %s921 = scalar_select %p920, %s26, 7
      %s922 = smul.addr %s919, 8
      %s923 = sadd.s32 %s921, %s922
      %s924 = smul.addr %s923, 4
      %s925 = scalar_lea.vmem %s7, %s924
      %p926 = scmp.lt.s32.totalorder %s25, 1
      %s927 = scalar_select %p926, %s25, 1
      %p928 = scmp.lt.s32.totalorder %s26, 7
      %s929 = scalar_select %p928, %s26, 7
      %s930 = smul.addr %s927, 8
      %s931 = sadd.s32 %s929, %s930
      %s932 = smul.addr %s931, 4
      %s933 = scalar_lea.vmem %s8, %s932
      %p934 = scmp.lt.s32.totalorder %s25, 1
      %s935 = scalar_select %p934, %s25, 1
      %p936 = scmp.lt.s32.totalorder %s26, 7
      %s937 = scalar_select %p936, %s26, 7
      %s938 = smul.addr %s935, 8
      %s939 = sadd.s32 %s937, %s938
      %s940 = smul.addr %s939, 4
      %s941 = scalar_lea.vmem %s9, %s940
      // Predicated region
      $region49: #{decoder_block.4} parent=47 // pred_check
        %p942 = pneg %p235
      $region50: #{decoder_block.4} parent=47 // pred_check_branch
        %944 = sbr.rel (%p942) target = $region52
      $region51: #{decoder_block.4} parent=47 // pred_region
        _
      $region52: #{decoder_block.4} parent=47 // pred_fallthru
        _
      // Predicated region
      $region53: #{decoder_block.4} parent=47 // pred_check
        %p945 = pneg %p263
      $region54: #{decoder_block.4} parent=47 // pred_check_branch
        %947 = sbr.rel (%p945) target = $region56
      $region55: #{decoder_block.4} parent=47 // pred_region
        _
      $region56: #{decoder_block.4} parent=47 // pred_fallthru
        _
      // Predicated region
      $region57: #{decoder_block.4} parent=47 // pred_check
        %p948 = pneg %p291
      $region58: #{decoder_block.4} parent=47 // pred_check_branch
        %950 = sbr.rel (%p948) target = $region60
      $region59: #{decoder_block.4} parent=47 // pred_region
        _
      $region60: #{decoder_block.4} parent=47 // pred_fallthru
        _
    $region48: #{decoder_block.4} parent=5 // pred_fallthru
      _
    %p951 = scmp.le.s32.totalorder 2, %s16
    // Predicated region
    $region61: #{decoder_block.4} parent=5 // pred_check
      %p952 = pneg %p951
    $region62: #{decoder_block.4} parent=5 // pred_check_branch
      %954 = sbr.rel (%p952) target = $region64
    $region63: #{decoder_block.4} parent=5 // pred_region
      %s955 = ssub.s32 %s16, 2
      // Predicated region
      $region65: #{decoder_block.4} parent=63 // pred_check
        %p956 = pneg %p241
      $region66: #{decoder_block.4} parent=63 // pred_check_branch
        %958 = sbr.rel (%p956) target = $region68
      $region67: #{decoder_block.4} parent=63 // pred_region
        %p959 = scmp.lt.s32.totalorder %s27, 1
        %s960 = scalar_select %p959, %s27, 1
        %p961 = scmp.lt.s32.totalorder %s28, 7
        %s962 = scalar_select %p961, %s28, 7
        %s963 = smul.addr %s960, 8
        %s964 = sadd.s32 %s962, %s963
        %s965 = smul.addr %s964, 4
        %s966 = scalar_lea.vmem %s7, %s965
      $region68: #{decoder_block.4} parent=63 // pred_fallthru
        _
      // Predicated region
      $region69: #{decoder_block.4} parent=63 // pred_check
        %p967 = pneg %p269
      $region70: #{decoder_block.4} parent=63 // pred_check_branch
        %969 = sbr.rel (%p967) target = $region72
      $region71: #{decoder_block.4} parent=63 // pred_region
        %p970 = scmp.lt.s32.totalorder %s27, 1
        %s971 = scalar_select %p970, %s27, 1
        %p972 = scmp.lt.s32.totalorder %s28, 7
        %s973 = scalar_select %p972, %s28, 7
        %s974 = smul.addr %s971, 8
        %s975 = sadd.s32 %s973, %s974
        %s976 = smul.addr %s975, 4
        %s977 = scalar_lea.vmem %s8, %s976
      $region72: #{decoder_block.4} parent=63 // pred_fallthru
        _
      // Predicated region
      $region73: #{decoder_block.4} parent=63 // pred_check
        %p978 = pneg %p297
      $region74: #{decoder_block.4} parent=63 // pred_check_branch
        %980 = sbr.rel (%p978) target = $region76
      $region75: #{decoder_block.4} parent=63 // pred_region
        %p981 = scmp.lt.s32.totalorder %s27, 1
        %s982 = scalar_select %p981, %s27, 1
        %p983 = scmp.lt.s32.totalorder %s28, 7
        %s984 = scalar_select %p983, %s28, 7
        %s985 = smul.addr %s982, 8
        %s986 = sadd.s32 %s984, %s985
        %s987 = smul.addr %s986, 4
        %s988 = scalar_lea.vmem %s9, %s987
      $region76: #{decoder_block.4} parent=63 // pred_fallthru
        _
    $region64: #{decoder_block.4} parent=5 // pred_fallthru
      _
  $region6: #{decoder_block.4} parent=0 // loop_footer
    %s20 = sadd.s32 1, %s16
  $region7: #{decoder_block.4} parent=0 // loop_footer_branch
    %15 = sbr.rel target = $region3
  $region8: #{decoder_block.4} parent=0 // loop_exit
    _

</llo_original>
